<compile_context>
chip_gen: v6e
topology: v6e:2x2x1
jax: 0.10.0
libtpu: 0.0.40
codegen_flags: <defaults>
</compile_context>

<pallas_src>
import math
import numpy as np
import jax
import jax.numpy as jnp
from jax import lax
from jax.experimental import pallas as pl
from jax.experimental.pallas import tpu as pltpu

# ---------------- config (small, consistent with the module) ----------------
B = 2            # batch
T = 8            # sequence length
D = 32           # config.dim (true feature width)
N_HEADS = 4      # config.n_heads
HEAD_DIM = D // N_HEADS
HIDDEN = 4 * D   # 128 (already lane-aligned)
LN_EPS = 1e-5

D_PAD = 128                                   # lane-dense padded feature width
HIDDEN_PAD = ((HIDDEN + 127) // 128) * 128    # 128


def _layer_norm(z, w, b):
    # One-pass stats with an explicit true-D denominator: padded lanes of z are
    # exactly zero, so sums over 128 lanes equal sums over the 32 real lanes.
    s1 = jnp.sum(z, axis=-1, keepdims=True)
    s2 = jnp.sum(z * z, axis=-1, keepdims=True)
    mu = s1 * (1.0 / D)
    var = s2 * (1.0 / D) - mu * mu
    # Padded lanes of w and b are zero -> LN output stays exactly zero there.
    return (z - mu) * lax.rsqrt(var + LN_EPS) * w + b


# ------------------------------ Pallas kernel -------------------------------
def transformer_block_kernel(
    x_ref,                        # (bb*T, D_PAD) activation slab (f32)
    ln1w_ref, ln1b_ref,           # (1, D_PAD)
    wq_ref, bq_ref,               # (D_PAD, D_PAD) [f32 or bf16], (1, D_PAD) f32
    wk_ref, bk_ref,
    wv_ref, bv_ref,
    wproj_ref, bproj_ref,         # (D_PAD, D_PAD), (1, D_PAD)
    ln2w_ref, ln2b_ref,           # (1, D_PAD)
    wfc_ref, bfc_ref,             # (D_PAD, HIDDEN_PAD), (1, HIDDEN_PAD)
    wfp_ref, bfp_ref,             # (HIDDEN_PAD, D_PAD), (1, D_PAD)
    o_ref,                        # (bb*T, D_PAD)
):
    rows = x_ref.shape[0]
    n_seq = rows // T             # sequences in this grid step (1 or B)
    cdt = wq_ref.dtype            # MXU operand dtype; accumulation stays f32

    x = x_ref[...]

    # ---- LayerNorm 1 ----
    h = _layer_norm(x, ln1w_ref[0], ln1b_ref[0])
    hc = h.astype(cdt)

    # ---- q/k/v projections over the whole lane-dense slab (3 MXU pushes) ----
    # (softmax 1/sqrt(head_dim) scale is pre-folded into wq/bq in the wrapper)
    q = jnp.dot(hc, wq_ref[...], preferred_element_type=jnp.float32) + bq_ref[0]
    k = jnp.dot(hc, wk_ref[...], preferred_element_type=jnp.float32) + bk_ref[0]
    v = jnp.dot(hc, wv_ref[...], preferred_element_type=jnp.float32) + bv_ref[0]

    # ---- attention in the padded-head lane layout ----
    # Head hh lives in lanes [hh*HEAD_DIM, (hh+1)*HEAD_DIM); lanes >= D are zero.
    # Lane masks keep the head axis out of any relayout (no slices/stacks/
    # transposes); per-head PV outputs are lane-disjoint so their sum is the
    # head-concat for free.
    lane = lax.broadcasted_iota(jnp.int32, (1, D_PAD), 1)
    masks = [
        jnp.where((lane >= hh * HEAD_DIM) & (lane < (hh + 1) * HEAD_DIM), 1.0, 0.0)
        for hh in range(N_HEADS)
    ]

    attn_blocks = []
    for s in range(n_seq):                 # static unroll: 1 or B(=2)
        lo = s * T
        q_s = q[lo:lo + T]
        k_s = k[lo:lo + T]
        v_s = v[lo:lo + T]
        acc = None
        for hh in range(N_HEADS):          # static unroll: 4
            m = masks[hh]
            sc = jnp.einsum('qd,kd->qk', q_s, k_s * m,
                            preferred_element_type=jnp.float32)        # (T, T)
            sc = sc - jnp.max(sc, axis=-1, keepdims=True)               # stable
            p = jnp.exp(sc)
            p = p * pl.reciprocal(jnp.sum(p, axis=-1, keepdims=True), approx=True)
            c = jnp.dot(p, v_s * m, preferred_element_type=jnp.float32)  # (T,D_PAD)
            acc = c if acc is None else acc + c
        attn_blocks.append(acc)
    attn = attn_blocks[0] if n_seq == 1 else jnp.concatenate(attn_blocks, axis=0)

    # fused head-merge is just the lane layout; one full-width output projection
    attn = jnp.dot(attn.astype(cdt), wproj_ref[...],
                   preferred_element_type=jnp.float32) + bproj_ref[0]
    x1 = x + attn                                                     # residual 1

    # ---- LayerNorm 2 + MLP: Linear -> exact (erf) GELU -> Linear ----
    h2 = _layer_norm(x1, ln2w_ref[0], ln2b_ref[0])
    f = jnp.dot(h2.astype(cdt), wfc_ref[...],
                preferred_element_type=jnp.float32) + bfc_ref[0]
    f = 0.5 * f * (1.0 + lax.erf(f * 0.7071067811865476))
    f = jnp.dot(f.astype(cdt), wfp_ref[...],
                preferred_element_type=jnp.float32) + bfp_ref[0]

    o_ref[...] = x1 + f                                               # residual 2


# ------------------------------- wrapper -------------------------------------
def _pad2(a, rows, cols):
    return jnp.zeros((rows, cols), a.dtype).at[:a.shape[0], :a.shape[1]].set(a)


def _prep_params(params, mxu_dtype):
    """Wrapper-side plumbing: split qkv, fold softmax scale, zero-pad to lane-dense
    shapes, cast MXU weights to the compute dtype (biases/LN params stay f32)."""
    (ln1w, ln1b, wqkv, bqkv, wproj, bproj,
     ln2w, ln2b, wfc, bfc, wfp, bfp) = params
    scale = 1.0 / math.sqrt(HEAD_DIM)
    wq, wk, wv = wqkv[:, :D] * scale, wqkv[:, D:2 * D], wqkv[:, 2 * D:]
    bq, bk, bv = bqkv[:, :D] * scale, bqkv[:, D:2 * D], bqkv[:, 2 * D:]

    def wpad(w):
        r = ((w.shape[0] + 127) // 128) * 128
        c = ((w.shape[1] + 127) // 128) * 128
        return _pad2(w, r, c).astype(mxu_dtype)

    def vpad(b, n=D_PAD):
        return _pad2(b, 1, n)

    return (
        vpad(ln1w), vpad(ln1b),
        wpad(wq), vpad(bq), wpad(wk), vpad(bk), wpad(wv), vpad(bv),
        wpad(wproj), vpad(bproj),
        vpad(ln2w), vpad(ln2b),
        wpad(wfc), vpad(bfc, HIDDEN_PAD), wpad(wfp), vpad(bfp),
    )


def transformer_block(x, params, *, fold_batch=True, mxu_bf16=True):
    # fold_batch=True (default on all generations, incl. v7x): whole batch in one
    # grid step -- per-core work here is far below per-step overhead and splitting
    # would duplicate the weight set in both cores' VMEM.
    bb = B if fold_batch else 1
    grid = (B // bb,)
    mxu_dtype = jnp.bfloat16 if mxu_bf16 else jnp.float32

    prepped = _prep_params(params, mxu_dtype)

    # lane-dense activation slab: (B, T, D) -> (B*T, D_PAD), padded lanes zero
    x2 = jnp.zeros((B * T, D_PAD), jnp.float32).at[:, :D].set(x.reshape(B * T, D))

    def const2d(r, c):
        # grid-invariant weight/bias block; grid has a single step by default so
        # each is DMA'd exactly once.
        return pl.BlockSpec((r, c), lambda g: (0, 0))

    in_specs = [
        pl.BlockSpec((bb * T, D_PAD), lambda g: (g, 0)),        # x slab
        const2d(1, D_PAD), const2d(1, D_PAD),                   # ln1 w/b
        const2d(D_PAD, D_PAD), const2d(1, D_PAD),               # wq, bq (pre-scaled)
        const2d(D_PAD, D_PAD), const2d(1, D_PAD),               # wk, bk
        const2d(D_PAD, D_PAD), const2d(1, D_PAD),               # wv, bv
        const2d(D_PAD, D_PAD), const2d(1, D_PAD),               # wproj, bproj
        const2d(1, D_PAD), const2d(1, D_PAD),                   # ln2 w/b
        const2d(D_PAD, HIDDEN_PAD), const2d(1, HIDDEN_PAD),     # c_fc
        const2d(HIDDEN_PAD, D_PAD), const2d(1, D_PAD),          # c_proj
    ]

    out = pl.pallas_call(
        transformer_block_kernel,
        out_shape=jax.ShapeDtypeStruct((B * T, D_PAD), jnp.float32),
        grid_spec=pltpu.PrefetchScalarGridSpec(
            num_scalar_prefetch=0,
            grid=grid,
            in_specs=in_specs,
            out_specs=pl.BlockSpec((bb * T, D_PAD), lambda g: (g, 0)),
        ),
        compiler_params=pltpu.CompilerParams(
            dimension_semantics=(("arbitrary",) if fold_batch else ("parallel",)),
            vmem_limit_bytes=32 * 1024 * 1024,
        ),
    )(x2, *prepped)
    return out[:, :D].reshape(B, T, D)


# --------------------------- pure-JAX reference -------------------------------
def reference(x, params):
    (ln1w, ln1b, wqkv, bqkv, wproj, bproj,
     ln2w, ln2b, wfc, bfc, wfp, bfp) = params

    def ln(z, w, b):
        mu = jnp.mean(z, -1, keepdims=True)
        var = jnp.mean((z - mu) ** 2, -1, keepdims=True)
        return (z - mu) / jnp.sqrt(var + LN_EPS) * w[0] + b[0]

    h = ln(x, ln1w, ln1b)
    qkv = h @ wqkv + bqkv[0]
    q, k, v = jnp.split(qkv, 3, axis=-1)
    q = q.reshape(B, T, N_HEADS, HEAD_DIM).transpose(0, 2, 1, 3)
    k = k.reshape(B, T, N_HEADS, HEAD_DIM).transpose(0, 2, 1, 3)
    v = v.reshape(B, T, N_HEADS, HEAD_DIM).transpose(0, 2, 1, 3)
    s = (q @ jnp.swapaxes(k, -1, -2)) / math.sqrt(HEAD_DIM)
    p = jax.nn.softmax(s, axis=-1)
    o = (p @ v).transpose(0, 2, 1, 3).reshape(B, T, D)
    o = o @ wproj + bproj[0]
    x1 = x + o
    h2 = ln(x1, ln2w, ln2b)
    f = h2 @ wfc + bfc[0]
    f = 0.5 * f * (1.0 + lax.erf(f * 0.7071067811865476))
    f = f @ wfp + bfp[0]
    return x1 + f


# ----------------------------------- main -------------------------------------
if __name__ == "__main__":
    key = jax.random.PRNGKey(0)
    keys = jax.random.split(key, 8)

    x = jax.random.normal(keys[0], (B, T, D), dtype=jnp.float32)

    def init_linear(k, fan_in, fan_out):
        bound = 1.0 / math.sqrt(fan_in)
        kw, kb = jax.random.split(k)
        w = jax.random.uniform(kw, (fan_in, fan_out), jnp.float32, -bound, bound)
        b = jax.random.uniform(kb, (1, fan_out), jnp.float32, -bound, bound)
        return w, b

    ln1w = jnp.ones((1, D), jnp.float32)
    ln1b = jnp.zeros((1, D), jnp.float32)
    ln2w = jnp.ones((1, D), jnp.float32)
    ln2b = jnp.zeros((1, D), jnp.float32)
    wqkv, bqkv = init_linear(keys[1], D, 3 * D)
    wproj, bproj = init_linear(keys[2], D, D)
    wfc, bfc = init_linear(keys[3], D, HIDDEN)
    wfp, bfp = init_linear(keys[4], HIDDEN, D)

    params = (ln1w, ln1b, wqkv, bqkv, wproj, bproj,
              ln2w, ln2b, wfc, bfc, wfp, bfp)

    ref = jax.block_until_ready(reference(x, params))

    # Tight correctness check: f32 MXU operands.  The only intentional numerics
    # deviation from the reference is pl.reciprocal(approx=True) in the softmax.
    out_f32 = jax.block_until_ready(transformer_block(x, params, mxu_bf16=False))
    np.testing.assert_allclose(np.asarray(out_f32), np.asarray(ref),
                               rtol=5e-4, atol=5e-4)

    # Perf-default path: bf16 MXU operands with f32 accumulation.  Compared
    # against the f32 reference with a tolerance re-baselined for bf16 matmuls.
    out_bf16 = jax.block_until_ready(transformer_block(x, params, mxu_bf16=True))
    np.testing.assert_allclose(np.asarray(out_bf16), np.asarray(ref),
                               rtol=1e-1, atol=1e-1)

    print("KERNEL_OK")
</pallas_src>

<mosaic_0001>
module attributes {stable_mosaic.version = 11 : i64} {
  func.func @transformer_block_kernel(%arg0: i32, %arg1: memref<16x128xf32, #tpu.memory_space<vmem>>, %arg2: memref<1x128xf32, #tpu.memory_space<vmem>>, %arg3: memref<1x128xf32, #tpu.memory_space<vmem>>, %arg4: memref<128x128xf32, #tpu.memory_space<vmem>>, %arg5: memref<1x128xf32, #tpu.memory_space<vmem>>, %arg6: memref<128x128xf32, #tpu.memory_space<vmem>>, %arg7: memref<1x128xf32, #tpu.memory_space<vmem>>, %arg8: memref<128x128xf32, #tpu.memory_space<vmem>>, %arg9: memref<1x128xf32, #tpu.memory_space<vmem>>, %arg10: memref<128x128xf32, #tpu.memory_space<vmem>>, %arg11: memref<1x128xf32, #tpu.memory_space<vmem>>, %arg12: memref<1x128xf32, #tpu.memory_space<vmem>>, %arg13: memref<1x128xf32, #tpu.memory_space<vmem>>, %arg14: memref<128x128xf32, #tpu.memory_space<vmem>>, %arg15: memref<1x128xf32, #tpu.memory_space<vmem>>, %arg16: memref<128x128xf32, #tpu.memory_space<vmem>>, %arg17: memref<1x128xf32, #tpu.memory_space<vmem>>, %arg18: memref<16x128xf32, #tpu.memory_space<vmem>>) attributes {dimension_semantics = [#tpu.dimension_semantics<arbitrary>], iteration_bounds = array<i64: 1>, scalar_prefetch = 0 : i64, scratch_operands = 0 : i64, tpu.core_type = #tpu.core_type<tc>, window_params = [{transform_indices = @transform_0, window_bounds = array<i64: 16, 128>}, {pipeline_mode = #tpu.pipeline_mode<synchronous>, transform_indices = @transform_1, window_bounds = array<i64: 1, 128>}, {pipeline_mode = #tpu.pipeline_mode<synchronous>, transform_indices = @transform_2, window_bounds = array<i64: 1, 128>}, {pipeline_mode = #tpu.pipeline_mode<synchronous>, transform_indices = @transform_3, window_bounds = array<i64: 128, 128>}, {pipeline_mode = #tpu.pipeline_mode<synchronous>, transform_indices = @transform_4, window_bounds = array<i64: 1, 128>}, {pipeline_mode = #tpu.pipeline_mode<synchronous>, transform_indices = @transform_5, window_bounds = array<i64: 128, 128>}, {pipeline_mode = #tpu.pipeline_mode<synchronous>, transform_indices = @transform_6, window_bounds = array<i64: 1, 128>}, {pipeline_mode = #tpu.pipeline_mode<synchronous>, transform_indices = @transform_7, window_bounds = array<i64: 128, 128>}, {pipeline_mode = #tpu.pipeline_mode<synchronous>, transform_indices = @transform_8, window_bounds = array<i64: 1, 128>}, {pipeline_mode = #tpu.pipeline_mode<synchronous>, transform_indices = @transform_9, window_bounds = array<i64: 128, 128>}, {pipeline_mode = #tpu.pipeline_mode<synchronous>, transform_indices = @transform_10, window_bounds = array<i64: 1, 128>}, {pipeline_mode = #tpu.pipeline_mode<synchronous>, transform_indices = @transform_11, window_bounds = array<i64: 1, 128>}, {pipeline_mode = #tpu.pipeline_mode<synchronous>, transform_indices = @transform_12, window_bounds = array<i64: 1, 128>}, {pipeline_mode = #tpu.pipeline_mode<synchronous>, transform_indices = @transform_13, window_bounds = array<i64: 128, 128>}, {pipeline_mode = #tpu.pipeline_mode<synchronous>, transform_indices = @transform_14, window_bounds = array<i64: 1, 128>}, {pipeline_mode = #tpu.pipeline_mode<synchronous>, transform_indices = @transform_15, window_bounds = array<i64: 128, 128>}, {pipeline_mode = #tpu.pipeline_mode<synchronous>, transform_indices = @transform_16, window_bounds = array<i64: 1, 128>}, {transform_indices = @transform_17, window_bounds = array<i64: 16, 128>}]} {
    %c0 = arith.constant 0 : index
    %c0_0 = arith.constant 0 : index
    %0 = vector.load %arg1[%c0, %c0_0] : memref<16x128xf32, #tpu.memory_space<vmem>>, vector<16x128xf32>
    %c0_1 = arith.constant 0 : index
    %c0_2 = arith.constant 0 : index
    %1 = vector.load %arg2[%c0_1, %c0_2] : memref<1x128xf32, #tpu.memory_space<vmem>>, vector<1x128xf32>
    %2 = vector.shape_cast %1 : vector<1x128xf32> to vector<128xf32>
    %c0_3 = arith.constant 0 : index
    %c0_4 = arith.constant 0 : index
    %3 = vector.load %arg3[%c0_3, %c0_4] : memref<1x128xf32, #tpu.memory_space<vmem>>, vector<1x128xf32>
    %4 = vector.shape_cast %3 : vector<1x128xf32> to vector<128xf32>
    %cst = arith.constant dense<0.000000e+00> : vector<16xf32>
    %5 = vector.multi_reduction <add>, %0, %cst [1] : vector<16x128xf32> to vector<16xf32>
    %6 = vector.shape_cast %5 : vector<16xf32> to vector<16x1xf32>
    %7 = arith.mulf %0, %0 : vector<16x128xf32>
    %cst_5 = arith.constant dense<0.000000e+00> : vector<16xf32>
    %8 = vector.multi_reduction <add>, %7, %cst_5 [1] : vector<16x128xf32> to vector<16xf32>
    %9 = vector.shape_cast %8 : vector<16xf32> to vector<16x1xf32>
    %cst_6 = arith.constant 3.125000e-02 : f32
    %10 = vector.broadcast %cst_6 : f32 to vector<16x1xf32>
    %11 = arith.mulf %6, %10 : vector<16x1xf32>
    %cst_7 = arith.constant 3.125000e-02 : f32
    %12 = vector.broadcast %cst_7 : f32 to vector<16x1xf32>
    %13 = arith.mulf %9, %12 : vector<16x1xf32>
    %14 = arith.mulf %11, %11 : vector<16x1xf32>
    %15 = arith.subf %13, %14 : vector<16x1xf32>
    %16 = vector.broadcast %11 : vector<16x1xf32> to vector<16x128xf32>
    %17 = arith.subf %0, %16 : vector<16x128xf32>
    %cst_8 = arith.constant 9.99999974E-6 : f32
    %18 = vector.broadcast %cst_8 : f32 to vector<16x1xf32>
    %19 = arith.addf %15, %18 : vector<16x1xf32>
    %20 = math.rsqrt %19 : vector<16x1xf32>
    %21 = vector.broadcast %20 : vector<16x1xf32> to vector<16x128xf32>
    %22 = arith.mulf %17, %21 : vector<16x128xf32>
    %23 = vector.shape_cast %2 : vector<128xf32> to vector<1x128xf32>
    %24 = vector.broadcast %23 : vector<1x128xf32> to vector<16x128xf32>
    %25 = arith.mulf %22, %24 : vector<16x128xf32>
    %26 = vector.shape_cast %4 : vector<128xf32> to vector<1x128xf32>
    %27 = vector.broadcast %26 : vector<1x128xf32> to vector<16x128xf32>
    %28 = arith.addf %25, %27 : vector<16x128xf32>
    %c0_9 = arith.constant 0 : index
    %c0_10 = arith.constant 0 : index
    %29 = vector.load %arg4[%c0_9, %c0_10] : memref<128x128xf32, #tpu.memory_space<vmem>>, vector<128x128xf32>
    %cst_11 = arith.constant dense<0.000000e+00> : vector<16x128xf32>
    %30 = tpu.matmul %28, %29, %cst_11 {dimension_numbers = #tpu.dot_dimension_numbers<[1], [0], [0], [1], [0, 0, 1, 1], [], []>} : vector<16x128xf32>, vector<128x128xf32>, vector<16x128xf32> -> vector<16x128xf32>
    %c0_12 = arith.constant 0 : index
    %c0_13 = arith.constant 0 : index
    %31 = vector.load %arg5[%c0_12, %c0_13] : memref<1x128xf32, #tpu.memory_space<vmem>>, vector<1x128xf32>
    %32 = vector.shape_cast %31 : vector<1x128xf32> to vector<128xf32>
    %33 = vector.shape_cast %32 : vector<128xf32> to vector<1x128xf32>
    %34 = vector.broadcast %33 : vector<1x128xf32> to vector<16x128xf32>
    %35 = arith.addf %30, %34 : vector<16x128xf32>
    %c0_14 = arith.constant 0 : index
    %c0_15 = arith.constant 0 : index
    %36 = vector.load %arg6[%c0_14, %c0_15] : memref<128x128xf32, #tpu.memory_space<vmem>>, vector<128x128xf32>
    %cst_16 = arith.constant dense<0.000000e+00> : vector<16x128xf32>
    %37 = tpu.matmul %28, %36, %cst_16 {dimension_numbers = #tpu.dot_dimension_numbers<[1], [0], [0], [1], [0, 0, 1, 1], [], []>} : vector<16x128xf32>, vector<128x128xf32>, vector<16x128xf32> -> vector<16x128xf32>
    %c0_17 = arith.constant 0 : index
    %c0_18 = arith.constant 0 : index
    %38 = vector.load %arg7[%c0_17, %c0_18] : memref<1x128xf32, #tpu.memory_space<vmem>>, vector<1x128xf32>
    %39 = vector.shape_cast %38 : vector<1x128xf32> to vector<128xf32>
    %40 = vector.shape_cast %39 : vector<128xf32> to vector<1x128xf32>
    %41 = vector.broadcast %40 : vector<1x128xf32> to vector<16x128xf32>
    %42 = arith.addf %37, %41 : vector<16x128xf32>
    %c0_19 = arith.constant 0 : index
    %c0_20 = arith.constant 0 : index
    %43 = vector.load %arg8[%c0_19, %c0_20] : memref<128x128xf32, #tpu.memory_space<vmem>>, vector<128x128xf32>
    %cst_21 = arith.constant dense<0.000000e+00> : vector<16x128xf32>
    %44 = tpu.matmul %28, %43, %cst_21 {dimension_numbers = #tpu.dot_dimension_numbers<[1], [0], [0], [1], [0, 0, 1, 1], [], []>} : vector<16x128xf32>, vector<128x128xf32>, vector<16x128xf32> -> vector<16x128xf32>
    %c0_22 = arith.constant 0 : index
    %c0_23 = arith.constant 0 : index
    %45 = vector.load %arg9[%c0_22, %c0_23] : memref<1x128xf32, #tpu.memory_space<vmem>>, vector<1x128xf32>
    %46 = vector.shape_cast %45 : vector<1x128xf32> to vector<128xf32>
    %47 = vector.shape_cast %46 : vector<128xf32> to vector<1x128xf32>
    %48 = vector.broadcast %47 : vector<1x128xf32> to vector<16x128xf32>
    %49 = arith.addf %44, %48 : vector<16x128xf32>
    %50 = tpu.iota {dimensions = array<i32: 1>} : vector<1x128xi32>
    %c0_i32 = arith.constant 0 : i32
    %51 = vector.broadcast %c0_i32 : i32 to vector<1x128xi32>
    %52 = arith.cmpi sge, %50, %51 : vector<1x128xi32>
    %c8_i32 = arith.constant 8 : i32
    %53 = vector.broadcast %c8_i32 : i32 to vector<1x128xi32>
    %54 = arith.cmpi slt, %50, %53 : vector<1x128xi32>
    %55 = arith.andi %52, %54 : vector<1x128xi1>
    %cst_24 = arith.constant 1.000000e+00 : f32
    %cst_25 = arith.constant 0.000000e+00 : f32
    %56 = vector.broadcast %cst_24 : f32 to vector<1x128xf32>
    %57 = vector.broadcast %cst_25 : f32 to vector<1x128xf32>
    %58 = arith.select %55, %56, %57 : vector<1x128xi1>, vector<1x128xf32>
    %c8_i32_26 = arith.constant 8 : i32
    %59 = vector.broadcast %c8_i32_26 : i32 to vector<1x128xi32>
    %60 = arith.cmpi sge, %50, %59 : vector<1x128xi32>
    %c16_i32 = arith.constant 16 : i32
    %61 = vector.broadcast %c16_i32 : i32 to vector<1x128xi32>
    %62 = arith.cmpi slt, %50, %61 : vector<1x128xi32>
    %63 = arith.andi %60, %62 : vector<1x128xi1>
    %cst_27 = arith.constant 1.000000e+00 : f32
    %cst_28 = arith.constant 0.000000e+00 : f32
    %64 = vector.broadcast %cst_27 : f32 to vector<1x128xf32>
    %65 = vector.broadcast %cst_28 : f32 to vector<1x128xf32>
    %66 = arith.select %63, %64, %65 : vector<1x128xi1>, vector<1x128xf32>
    %c16_i32_29 = arith.constant 16 : i32
    %67 = vector.broadcast %c16_i32_29 : i32 to vector<1x128xi32>
    %68 = arith.cmpi sge, %50, %67 : vector<1x128xi32>
    %c24_i32 = arith.constant 24 : i32
    %69 = vector.broadcast %c24_i32 : i32 to vector<1x128xi32>
    %70 = arith.cmpi slt, %50, %69 : vector<1x128xi32>
    %71 = arith.andi %68, %70 : vector<1x128xi1>
    %cst_30 = arith.constant 1.000000e+00 : f32
    %cst_31 = arith.constant 0.000000e+00 : f32
    %72 = vector.broadcast %cst_30 : f32 to vector<1x128xf32>
    %73 = vector.broadcast %cst_31 : f32 to vector<1x128xf32>
    %74 = arith.select %71, %72, %73 : vector<1x128xi1>, vector<1x128xf32>
    %c24_i32_32 = arith.constant 24 : i32
    %75 = vector.broadcast %c24_i32_32 : i32 to vector<1x128xi32>
    %76 = arith.cmpi sge, %50, %75 : vector<1x128xi32>
    %c32_i32 = arith.constant 32 : i32
    %77 = vector.broadcast %c32_i32 : i32 to vector<1x128xi32>
    %78 = arith.cmpi slt, %50, %77 : vector<1x128xi32>
    %79 = arith.andi %76, %78 : vector<1x128xi1>
    %cst_33 = arith.constant 1.000000e+00 : f32
    %cst_34 = arith.constant 0.000000e+00 : f32
    %80 = vector.broadcast %cst_33 : f32 to vector<1x128xf32>
    %81 = vector.broadcast %cst_34 : f32 to vector<1x128xf32>
    %82 = arith.select %79, %80, %81 : vector<1x128xi1>, vector<1x128xf32>
    %83 = vector.extract_strided_slice %35 {offsets = [0, 0], sizes = [8, 128], strides = [1, 1]} : vector<16x128xf32> to vector<8x128xf32>
    %84 = vector.extract_strided_slice %42 {offsets = [0, 0], sizes = [8, 128], strides = [1, 1]} : vector<16x128xf32> to vector<8x128xf32>
    %85 = vector.extract_strided_slice %49 {offsets = [0, 0], sizes = [8, 128], strides = [1, 1]} : vector<16x128xf32> to vector<8x128xf32>
    %86 = vector.broadcast %58 : vector<1x128xf32> to vector<8x128xf32>
    %87 = arith.mulf %84, %86 : vector<8x128xf32>
    "tpu.trace_start"() <{level = 10 : i32, message = "qd,kd->qk"}> : () -> ()
    %cst_35 = arith.constant dense<0.000000e+00> : vector<8x8xf32>
    %88 = tpu.matmul %83, %87, %cst_35 {dimension_numbers = #tpu.dot_dimension_numbers<[1], [1], [0], [0], [0, 0, 1, 0], [], []>} : vector<8x128xf32>, vector<8x128xf32>, vector<8x8xf32> -> vector<8x8xf32>
    "tpu.trace_stop"() : () -> ()
    %cst_36 = arith.constant dense<0xFF800000> : vector<8xf32>
    %89 = vector.multi_reduction <maximumf>, %88, %cst_36 [1] : vector<8x8xf32> to vector<8xf32>
    %90 = vector.shape_cast %89 : vector<8xf32> to vector<8x1xf32>
    %91 = vector.broadcast %90 : vector<8x1xf32> to vector<8x8xf32>
    %92 = arith.subf %88, %91 : vector<8x8xf32>
    %93 = math.exp %92 : vector<8x8xf32>
    %cst_37 = arith.constant dense<0.000000e+00> : vector<8xf32>
    %94 = vector.multi_reduction <add>, %93, %cst_37 [1] : vector<8x8xf32> to vector<8xf32>
    %95 = vector.shape_cast %94 : vector<8xf32> to vector<8x1xf32>
    %96 = tpu.reciprocal %95 {approx = true} : vector<8x1xf32> -> vector<8x1xf32>
    %97 = vector.broadcast %96 : vector<8x1xf32> to vector<8x8xf32>
    %98 = arith.mulf %93, %97 : vector<8x8xf32>
    %99 = vector.broadcast %58 : vector<1x128xf32> to vector<8x128xf32>
    %100 = arith.mulf %85, %99 : vector<8x128xf32>
    %cst_38 = arith.constant dense<0.000000e+00> : vector<8x128xf32>
    %101 = tpu.matmul %98, %100, %cst_38 {dimension_numbers = #tpu.dot_dimension_numbers<[1], [0], [0], [1], [0, 0, 1, 1], [], []>} : vector<8x8xf32>, vector<8x128xf32>, vector<8x128xf32> -> vector<8x128xf32>
    %102 = vector.broadcast %66 : vector<1x128xf32> to vector<8x128xf32>
    %103 = arith.mulf %84, %102 : vector<8x128xf32>
    "tpu.trace_start"() <{level = 10 : i32, message = "qd,kd->qk"}> : () -> ()
    %cst_39 = arith.constant dense<0.000000e+00> : vector<8x8xf32>
    %104 = tpu.matmul %83, %103, %cst_39 {dimension_numbers = #tpu.dot_dimension_numbers<[1], [1], [0], [0], [0, 0, 1, 0], [], []>} : vector<8x128xf32>, vector<8x128xf32>, vector<8x8xf32> -> vector<8x8xf32>
    "tpu.trace_stop"() : () -> ()
    %cst_40 = arith.constant dense<0xFF800000> : vector<8xf32>
    %105 = vector.multi_reduction <maximumf>, %104, %cst_40 [1] : vector<8x8xf32> to vector<8xf32>
    %106 = vector.shape_cast %105 : vector<8xf32> to vector<8x1xf32>
    %107 = vector.broadcast %106 : vector<8x1xf32> to vector<8x8xf32>
    %108 = arith.subf %104, %107 : vector<8x8xf32>
    %109 = math.exp %108 : vector<8x8xf32>
    %cst_41 = arith.constant dense<0.000000e+00> : vector<8xf32>
    %110 = vector.multi_reduction <add>, %109, %cst_41 [1] : vector<8x8xf32> to vector<8xf32>
    %111 = vector.shape_cast %110 : vector<8xf32> to vector<8x1xf32>
    %112 = tpu.reciprocal %111 {approx = true} : vector<8x1xf32> -> vector<8x1xf32>
    %113 = vector.broadcast %112 : vector<8x1xf32> to vector<8x8xf32>
    %114 = arith.mulf %109, %113 : vector<8x8xf32>
    %115 = vector.broadcast %66 : vector<1x128xf32> to vector<8x128xf32>
    %116 = arith.mulf %85, %115 : vector<8x128xf32>
    %cst_42 = arith.constant dense<0.000000e+00> : vector<8x128xf32>
    %117 = tpu.matmul %114, %116, %cst_42 {dimension_numbers = #tpu.dot_dimension_numbers<[1], [0], [0], [1], [0, 0, 1, 1], [], []>} : vector<8x8xf32>, vector<8x128xf32>, vector<8x128xf32> -> vector<8x128xf32>
    %118 = arith.addf %101, %117 : vector<8x128xf32>
    %119 = vector.broadcast %74 : vector<1x128xf32> to vector<8x128xf32>
    %120 = arith.mulf %84, %119 : vector<8x128xf32>
    "tpu.trace_start"() <{level = 10 : i32, message = "qd,kd->qk"}> : () -> ()
    %cst_43 = arith.constant dense<0.000000e+00> : vector<8x8xf32>
    %121 = tpu.matmul %83, %120, %cst_43 {dimension_numbers = #tpu.dot_dimension_numbers<[1], [1], [0], [0], [0, 0, 1, 0], [], []>} : vector<8x128xf32>, vector<8x128xf32>, vector<8x8xf32> -> vector<8x8xf32>
    "tpu.trace_stop"() : () -> ()
    %cst_44 = arith.constant dense<0xFF800000> : vector<8xf32>
    %122 = vector.multi_reduction <maximumf>, %121, %cst_44 [1] : vector<8x8xf32> to vector<8xf32>
    %123 = vector.shape_cast %122 : vector<8xf32> to vector<8x1xf32>
    %124 = vector.broadcast %123 : vector<8x1xf32> to vector<8x8xf32>
    %125 = arith.subf %121, %124 : vector<8x8xf32>
    %126 = math.exp %125 : vector<8x8xf32>
    %cst_45 = arith.constant dense<0.000000e+00> : vector<8xf32>
    %127 = vector.multi_reduction <add>, %126, %cst_45 [1] : vector<8x8xf32> to vector<8xf32>
    %128 = vector.shape_cast %127 : vector<8xf32> to vector<8x1xf32>
    %129 = tpu.reciprocal %128 {approx = true} : vector<8x1xf32> -> vector<8x1xf32>
    %130 = vector.broadcast %129 : vector<8x1xf32> to vector<8x8xf32>
    %131 = arith.mulf %126, %130 : vector<8x8xf32>
    %132 = vector.broadcast %74 : vector<1x128xf32> to vector<8x128xf32>
    %133 = arith.mulf %85, %132 : vector<8x128xf32>
    %cst_46 = arith.constant dense<0.000000e+00> : vector<8x128xf32>
    %134 = tpu.matmul %131, %133, %cst_46 {dimension_numbers = #tpu.dot_dimension_numbers<[1], [0], [0], [1], [0, 0, 1, 1], [], []>} : vector<8x8xf32>, vector<8x128xf32>, vector<8x128xf32> -> vector<8x128xf32>
    %135 = arith.addf %118, %134 : vector<8x128xf32>
    %136 = vector.broadcast %82 : vector<1x128xf32> to vector<8x128xf32>
    %137 = arith.mulf %84, %136 : vector<8x128xf32>
    "tpu.trace_start"() <{level = 10 : i32, message = "qd,kd->qk"}> : () -> ()
    %cst_47 = arith.constant dense<0.000000e+00> : vector<8x8xf32>
    %138 = tpu.matmul %83, %137, %cst_47 {dimension_numbers = #tpu.dot_dimension_numbers<[1], [1], [0], [0], [0, 0, 1, 0], [], []>} : vector<8x128xf32>, vector<8x128xf32>, vector<8x8xf32> -> vector<8x8xf32>
    "tpu.trace_stop"() : () -> ()
    %cst_48 = arith.constant dense<0xFF800000> : vector<8xf32>
    %139 = vector.multi_reduction <maximumf>, %138, %cst_48 [1] : vector<8x8xf32> to vector<8xf32>
    %140 = vector.shape_cast %139 : vector<8xf32> to vector<8x1xf32>
    %141 = vector.broadcast %140 : vector<8x1xf32> to vector<8x8xf32>
    %142 = arith.subf %138, %141 : vector<8x8xf32>
    %143 = math.exp %142 : vector<8x8xf32>
    %cst_49 = arith.constant dense<0.000000e+00> : vector<8xf32>
    %144 = vector.multi_reduction <add>, %143, %cst_49 [1] : vector<8x8xf32> to vector<8xf32>
    %145 = vector.shape_cast %144 : vector<8xf32> to vector<8x1xf32>
    %146 = tpu.reciprocal %145 {approx = true} : vector<8x1xf32> -> vector<8x1xf32>
    %147 = vector.broadcast %146 : vector<8x1xf32> to vector<8x8xf32>
    %148 = arith.mulf %143, %147 : vector<8x8xf32>
    %149 = vector.broadcast %82 : vector<1x128xf32> to vector<8x128xf32>
    %150 = arith.mulf %85, %149 : vector<8x128xf32>
    %cst_50 = arith.constant dense<0.000000e+00> : vector<8x128xf32>
    %151 = tpu.matmul %148, %150, %cst_50 {dimension_numbers = #tpu.dot_dimension_numbers<[1], [0], [0], [1], [0, 0, 1, 1], [], []>} : vector<8x8xf32>, vector<8x128xf32>, vector<8x128xf32> -> vector<8x128xf32>
    %152 = arith.addf %135, %151 : vector<8x128xf32>
    %153 = vector.extract_strided_slice %35 {offsets = [8, 0], sizes = [8, 128], strides = [1, 1]} : vector<16x128xf32> to vector<8x128xf32>
    %154 = vector.extract_strided_slice %42 {offsets = [8, 0], sizes = [8, 128], strides = [1, 1]} : vector<16x128xf32> to vector<8x128xf32>
    %155 = vector.extract_strided_slice %49 {offsets = [8, 0], sizes = [8, 128], strides = [1, 1]} : vector<16x128xf32> to vector<8x128xf32>
    %156 = vector.broadcast %58 : vector<1x128xf32> to vector<8x128xf32>
    %157 = arith.mulf %154, %156 : vector<8x128xf32>
    "tpu.trace_start"() <{level = 10 : i32, message = "qd,kd->qk"}> : () -> ()
    %cst_51 = arith.constant dense<0.000000e+00> : vector<8x8xf32>
    %158 = tpu.matmul %153, %157, %cst_51 {dimension_numbers = #tpu.dot_dimension_numbers<[1], [1], [0], [0], [0, 0, 1, 0], [], []>} : vector<8x128xf32>, vector<8x128xf32>, vector<8x8xf32> -> vector<8x8xf32>
    "tpu.trace_stop"() : () -> ()
    %cst_52 = arith.constant dense<0xFF800000> : vector<8xf32>
    %159 = vector.multi_reduction <maximumf>, %158, %cst_52 [1] : vector<8x8xf32> to vector<8xf32>
    %160 = vector.shape_cast %159 : vector<8xf32> to vector<8x1xf32>
    %161 = vector.broadcast %160 : vector<8x1xf32> to vector<8x8xf32>
    %162 = arith.subf %158, %161 : vector<8x8xf32>
    %163 = math.exp %162 : vector<8x8xf32>
    %cst_53 = arith.constant dense<0.000000e+00> : vector<8xf32>
    %164 = vector.multi_reduction <add>, %163, %cst_53 [1] : vector<8x8xf32> to vector<8xf32>
    %165 = vector.shape_cast %164 : vector<8xf32> to vector<8x1xf32>
    %166 = tpu.reciprocal %165 {approx = true} : vector<8x1xf32> -> vector<8x1xf32>
    %167 = vector.broadcast %166 : vector<8x1xf32> to vector<8x8xf32>
    %168 = arith.mulf %163, %167 : vector<8x8xf32>
    %169 = vector.broadcast %58 : vector<1x128xf32> to vector<8x128xf32>
    %170 = arith.mulf %155, %169 : vector<8x128xf32>
    %cst_54 = arith.constant dense<0.000000e+00> : vector<8x128xf32>
    %171 = tpu.matmul %168, %170, %cst_54 {dimension_numbers = #tpu.dot_dimension_numbers<[1], [0], [0], [1], [0, 0, 1, 1], [], []>} : vector<8x8xf32>, vector<8x128xf32>, vector<8x128xf32> -> vector<8x128xf32>
    %172 = vector.broadcast %66 : vector<1x128xf32> to vector<8x128xf32>
    %173 = arith.mulf %154, %172 : vector<8x128xf32>
    "tpu.trace_start"() <{level = 10 : i32, message = "qd,kd->qk"}> : () -> ()
    %cst_55 = arith.constant dense<0.000000e+00> : vector<8x8xf32>
    %174 = tpu.matmul %153, %173, %cst_55 {dimension_numbers = #tpu.dot_dimension_numbers<[1], [1], [0], [0], [0, 0, 1, 0], [], []>} : vector<8x128xf32>, vector<8x128xf32>, vector<8x8xf32> -> vector<8x8xf32>
    "tpu.trace_stop"() : () -> ()
    %cst_56 = arith.constant dense<0xFF800000> : vector<8xf32>
    %175 = vector.multi_reduction <maximumf>, %174, %cst_56 [1] : vector<8x8xf32> to vector<8xf32>
    %176 = vector.shape_cast %175 : vector<8xf32> to vector<8x1xf32>
    %177 = vector.broadcast %176 : vector<8x1xf32> to vector<8x8xf32>
    %178 = arith.subf %174, %177 : vector<8x8xf32>
    %179 = math.exp %178 : vector<8x8xf32>
    %cst_57 = arith.constant dense<0.000000e+00> : vector<8xf32>
    %180 = vector.multi_reduction <add>, %179, %cst_57 [1] : vector<8x8xf32> to vector<8xf32>
    %181 = vector.shape_cast %180 : vector<8xf32> to vector<8x1xf32>
    %182 = tpu.reciprocal %181 {approx = true} : vector<8x1xf32> -> vector<8x1xf32>
    %183 = vector.broadcast %182 : vector<8x1xf32> to vector<8x8xf32>
    %184 = arith.mulf %179, %183 : vector<8x8xf32>
    %185 = vector.broadcast %66 : vector<1x128xf32> to vector<8x128xf32>
    %186 = arith.mulf %155, %185 : vector<8x128xf32>
    %cst_58 = arith.constant dense<0.000000e+00> : vector<8x128xf32>
    %187 = tpu.matmul %184, %186, %cst_58 {dimension_numbers = #tpu.dot_dimension_numbers<[1], [0], [0], [1], [0, 0, 1, 1], [], []>} : vector<8x8xf32>, vector<8x128xf32>, vector<8x128xf32> -> vector<8x128xf32>
    %188 = arith.addf %171, %187 : vector<8x128xf32>
    %189 = vector.broadcast %74 : vector<1x128xf32> to vector<8x128xf32>
    %190 = arith.mulf %154, %189 : vector<8x128xf32>
    "tpu.trace_start"() <{level = 10 : i32, message = "qd,kd->qk"}> : () -> ()
    %cst_59 = arith.constant dense<0.000000e+00> : vector<8x8xf32>
    %191 = tpu.matmul %153, %190, %cst_59 {dimension_numbers = #tpu.dot_dimension_numbers<[1], [1], [0], [0], [0, 0, 1, 0], [], []>} : vector<8x128xf32>, vector<8x128xf32>, vector<8x8xf32> -> vector<8x8xf32>
    "tpu.trace_stop"() : () -> ()
    %cst_60 = arith.constant dense<0xFF800000> : vector<8xf32>
    %192 = vector.multi_reduction <maximumf>, %191, %cst_60 [1] : vector<8x8xf32> to vector<8xf32>
    %193 = vector.shape_cast %192 : vector<8xf32> to vector<8x1xf32>
    %194 = vector.broadcast %193 : vector<8x1xf32> to vector<8x8xf32>
    %195 = arith.subf %191, %194 : vector<8x8xf32>
    %196 = math.exp %195 : vector<8x8xf32>
    %cst_61 = arith.constant dense<0.000000e+00> : vector<8xf32>
    %197 = vector.multi_reduction <add>, %196, %cst_61 [1] : vector<8x8xf32> to vector<8xf32>
    %198 = vector.shape_cast %197 : vector<8xf32> to vector<8x1xf32>
    %199 = tpu.reciprocal %198 {approx = true} : vector<8x1xf32> -> vector<8x1xf32>
    %200 = vector.broadcast %199 : vector<8x1xf32> to vector<8x8xf32>
    %201 = arith.mulf %196, %200 : vector<8x8xf32>
    %202 = vector.broadcast %74 : vector<1x128xf32> to vector<8x128xf32>
    %203 = arith.mulf %155, %202 : vector<8x128xf32>
    %cst_62 = arith.constant dense<0.000000e+00> : vector<8x128xf32>
    %204 = tpu.matmul %201, %203, %cst_62 {dimension_numbers = #tpu.dot_dimension_numbers<[1], [0], [0], [1], [0, 0, 1, 1], [], []>} : vector<8x8xf32>, vector<8x128xf32>, vector<8x128xf32> -> vector<8x128xf32>
    %205 = arith.addf %188, %204 : vector<8x128xf32>
    %206 = vector.broadcast %82 : vector<1x128xf32> to vector<8x128xf32>
    %207 = arith.mulf %154, %206 : vector<8x128xf32>
    "tpu.trace_start"() <{level = 10 : i32, message = "qd,kd->qk"}> : () -> ()
    %cst_63 = arith.constant dense<0.000000e+00> : vector<8x8xf32>
    %208 = tpu.matmul %153, %207, %cst_63 {dimension_numbers = #tpu.dot_dimension_numbers<[1], [1], [0], [0], [0, 0, 1, 0], [], []>} : vector<8x128xf32>, vector<8x128xf32>, vector<8x8xf32> -> vector<8x8xf32>
    "tpu.trace_stop"() : () -> ()
    %cst_64 = arith.constant dense<0xFF800000> : vector<8xf32>
    %209 = vector.multi_reduction <maximumf>, %208, %cst_64 [1] : vector<8x8xf32> to vector<8xf32>
    %210 = vector.shape_cast %209 : vector<8xf32> to vector<8x1xf32>
    %211 = vector.broadcast %210 : vector<8x1xf32> to vector<8x8xf32>
    %212 = arith.subf %208, %211 : vector<8x8xf32>
    %213 = math.exp %212 : vector<8x8xf32>
    %cst_65 = arith.constant dense<0.000000e+00> : vector<8xf32>
    %214 = vector.multi_reduction <add>, %213, %cst_65 [1] : vector<8x8xf32> to vector<8xf32>
    %215 = vector.shape_cast %214 : vector<8xf32> to vector<8x1xf32>
    %216 = tpu.reciprocal %215 {approx = true} : vector<8x1xf32> -> vector<8x1xf32>
    %217 = vector.broadcast %216 : vector<8x1xf32> to vector<8x8xf32>
    %218 = arith.mulf %213, %217 : vector<8x8xf32>
    %219 = vector.broadcast %82 : vector<1x128xf32> to vector<8x128xf32>
    %220 = arith.mulf %155, %219 : vector<8x128xf32>
    %cst_66 = arith.constant dense<0.000000e+00> : vector<8x128xf32>
    %221 = tpu.matmul %218, %220, %cst_66 {dimension_numbers = #tpu.dot_dimension_numbers<[1], [0], [0], [1], [0, 0, 1, 1], [], []>} : vector<8x8xf32>, vector<8x128xf32>, vector<8x128xf32> -> vector<8x128xf32>
    %222 = arith.addf %205, %221 : vector<8x128xf32>
    %223 = tpu.concatenate %152, %222 in 0 : vector<8x128xf32>, vector<8x128xf32> -> vector<16x128xf32>
    %c0_67 = arith.constant 0 : index
    %c0_68 = arith.constant 0 : index
    %224 = vector.load %arg10[%c0_67, %c0_68] : memref<128x128xf32, #tpu.memory_space<vmem>>, vector<128x128xf32>
    %cst_69 = arith.constant dense<0.000000e+00> : vector<16x128xf32>
    %225 = tpu.matmul %223, %224, %cst_69 {dimension_numbers = #tpu.dot_dimension_numbers<[1], [0], [0], [1], [0, 0, 1, 1], [], []>} : vector<16x128xf32>, vector<128x128xf32>, vector<16x128xf32> -> vector<16x128xf32>
    %c0_70 = arith.constant 0 : index
    %c0_71 = arith.constant 0 : index
    %226 = vector.load %arg11[%c0_70, %c0_71] : memref<1x128xf32, #tpu.memory_space<vmem>>, vector<1x128xf32>
    %227 = vector.shape_cast %226 : vector<1x128xf32> to vector<128xf32>
    %228 = vector.shape_cast %227 : vector<128xf32> to vector<1x128xf32>
    %229 = vector.broadcast %228 : vector<1x128xf32> to vector<16x128xf32>
    %230 = arith.addf %225, %229 : vector<16x128xf32>
    %231 = arith.addf %0, %230 : vector<16x128xf32>
    %c0_72 = arith.constant 0 : index
    %c0_73 = arith.constant 0 : index
    %232 = vector.load %arg12[%c0_72, %c0_73] : memref<1x128xf32, #tpu.memory_space<vmem>>, vector<1x128xf32>
    %233 = vector.shape_cast %232 : vector<1x128xf32> to vector<128xf32>
    %c0_74 = arith.constant 0 : index
    %c0_75 = arith.constant 0 : index
    %234 = vector.load %arg13[%c0_74, %c0_75] : memref<1x128xf32, #tpu.memory_space<vmem>>, vector<1x128xf32>
    %235 = vector.shape_cast %234 : vector<1x128xf32> to vector<128xf32>
    %cst_76 = arith.constant dense<0.000000e+00> : vector<16xf32>
    %236 = vector.multi_reduction <add>, %231, %cst_76 [1] : vector<16x128xf32> to vector<16xf32>
    %237 = vector.shape_cast %236 : vector<16xf32> to vector<16x1xf32>
    %238 = arith.mulf %231, %231 : vector<16x128xf32>
    %cst_77 = arith.constant dense<0.000000e+00> : vector<16xf32>
    %239 = vector.multi_reduction <add>, %238, %cst_77 [1] : vector<16x128xf32> to vector<16xf32>
    %240 = vector.shape_cast %239 : vector<16xf32> to vector<16x1xf32>
    %cst_78 = arith.constant 3.125000e-02 : f32
    %241 = vector.broadcast %cst_78 : f32 to vector<16x1xf32>
    %242 = arith.mulf %237, %241 : vector<16x1xf32>
    %cst_79 = arith.constant 3.125000e-02 : f32
    %243 = vector.broadcast %cst_79 : f32 to vector<16x1xf32>
    %244 = arith.mulf %240, %243 : vector<16x1xf32>
    %245 = arith.mulf %242, %242 : vector<16x1xf32>
    %246 = arith.subf %244, %245 : vector<16x1xf32>
    %247 = vector.broadcast %242 : vector<16x1xf32> to vector<16x128xf32>
    %248 = arith.subf %231, %247 : vector<16x128xf32>
    %cst_80 = arith.constant 9.99999974E-6 : f32
    %249 = vector.broadcast %cst_80 : f32 to vector<16x1xf32>
    %250 = arith.addf %246, %249 : vector<16x1xf32>
    %251 = math.rsqrt %250 : vector<16x1xf32>
    %252 = vector.broadcast %251 : vector<16x1xf32> to vector<16x128xf32>
    %253 = arith.mulf %248, %252 : vector<16x128xf32>
    %254 = vector.shape_cast %233 : vector<128xf32> to vector<1x128xf32>
    %255 = vector.broadcast %254 : vector<1x128xf32> to vector<16x128xf32>
    %256 = arith.mulf %253, %255 : vector<16x128xf32>
    %257 = vector.shape_cast %235 : vector<128xf32> to vector<1x128xf32>
    %258 = vector.broadcast %257 : vector<1x128xf32> to vector<16x128xf32>
    %259 = arith.addf %256, %258 : vector<16x128xf32>
    %c0_81 = arith.constant 0 : index
    %c0_82 = arith.constant 0 : index
    %260 = vector.load %arg14[%c0_81, %c0_82] : memref<128x128xf32, #tpu.memory_space<vmem>>, vector<128x128xf32>
    %cst_83 = arith.constant dense<0.000000e+00> : vector<16x128xf32>
    %261 = tpu.matmul %259, %260, %cst_83 {dimension_numbers = #tpu.dot_dimension_numbers<[1], [0], [0], [1], [0, 0, 1, 1], [], []>} : vector<16x128xf32>, vector<128x128xf32>, vector<16x128xf32> -> vector<16x128xf32>
    %c0_84 = arith.constant 0 : index
    %c0_85 = arith.constant 0 : index
    %262 = vector.load %arg15[%c0_84, %c0_85] : memref<1x128xf32, #tpu.memory_space<vmem>>, vector<1x128xf32>
    %263 = vector.shape_cast %262 : vector<1x128xf32> to vector<128xf32>
    %264 = vector.shape_cast %263 : vector<128xf32> to vector<1x128xf32>
    %265 = vector.broadcast %264 : vector<1x128xf32> to vector<16x128xf32>
    %266 = arith.addf %261, %265 : vector<16x128xf32>
    %cst_86 = arith.constant 5.000000e-01 : f32
    %267 = vector.broadcast %cst_86 : f32 to vector<16x128xf32>
    %268 = arith.mulf %267, %266 : vector<16x128xf32>
    %cst_87 = arith.constant 0.707106769 : f32
    %269 = vector.broadcast %cst_87 : f32 to vector<16x128xf32>
    %270 = arith.mulf %266, %269 : vector<16x128xf32>
    %271 = math.erf %270 : vector<16x128xf32>
    %cst_88 = arith.constant 1.000000e+00 : f32
    %272 = vector.broadcast %cst_88 : f32 to vector<16x128xf32>
    %273 = arith.addf %272, %271 : vector<16x128xf32>
    %274 = arith.mulf %268, %273 : vector<16x128xf32>
    %c0_89 = arith.constant 0 : index
    %c0_90 = arith.constant 0 : index
    %275 = vector.load %arg16[%c0_89, %c0_90] : memref<128x128xf32, #tpu.memory_space<vmem>>, vector<128x128xf32>
    %cst_91 = arith.constant dense<0.000000e+00> : vector<16x128xf32>
    %276 = tpu.matmul %274, %275, %cst_91 {dimension_numbers = #tpu.dot_dimension_numbers<[1], [0], [0], [1], [0, 0, 1, 1], [], []>} : vector<16x128xf32>, vector<128x128xf32>, vector<16x128xf32> -> vector<16x128xf32>
    %c0_92 = arith.constant 0 : index
    %c0_93 = arith.constant 0 : index
    %277 = vector.load %arg17[%c0_92, %c0_93] : memref<1x128xf32, #tpu.memory_space<vmem>>, vector<1x128xf32>
    %278 = vector.shape_cast %277 : vector<1x128xf32> to vector<128xf32>
    %279 = vector.shape_cast %278 : vector<128xf32> to vector<1x128xf32>
    %280 = vector.broadcast %279 : vector<1x128xf32> to vector<16x128xf32>
    %281 = arith.addf %276, %280 : vector<16x128xf32>
    %282 = arith.addf %231, %281 : vector<16x128xf32>
    %c0_94 = arith.constant 0 : index
    %c0_95 = arith.constant 0 : index
    %283 = vector.load %arg18[%c0_94, %c0_95] : memref<16x128xf32, #tpu.memory_space<vmem>>, vector<16x128xf32>
    tpu.vector_store %arg18[%c0_94, %c0_95], %282 {strides = array<i32>} : memref<16x128xf32, #tpu.memory_space<vmem>>, vector<16x128xf32>,
    return
  }
  func.func @transform_0(%arg0: i32) -> (i32, i32) {
    %c0_i32 = arith.constant 0 : i32
    %c0_i32_0 = arith.constant 0 : i32
    return %arg0, %c0_i32 : i32, i32
  }
  func.func @transform_1(%arg0: i32) -> (i32, i32) {
    %c0_i32 = arith.constant 0 : i32
    %c0_i32_0 = arith.constant 0 : i32
    %c0_i32_1 = arith.constant 0 : i32
    return %c0_i32, %c0_i32_0 : i32, i32
  }
  func.func @transform_2(%arg0: i32) -> (i32, i32) {
    %c0_i32 = arith.constant 0 : i32
    %c0_i32_0 = arith.constant 0 : i32
    %c0_i32_1 = arith.constant 0 : i32
    return %c0_i32, %c0_i32_0 : i32, i32
  }
  func.func @transform_3(%arg0: i32) -> (i32, i32) {
    %c0_i32 = arith.constant 0 : i32
    %c0_i32_0 = arith.constant 0 : i32
    %c0_i32_1 = arith.constant 0 : i32
    return %c0_i32, %c0_i32_0 : i32, i32
  }
  func.func @transform_4(%arg0: i32) -> (i32, i32) {
    %c0_i32 = arith.constant 0 : i32
    %c0_i32_0 = arith.constant 0 : i32
    %c0_i32_1 = arith.constant 0 : i32
    return %c0_i32, %c0_i32_0 : i32, i32
  }
  func.func @transform_5(%arg0: i32) -> (i32, i32) {
    %c0_i32 = arith.constant 0 : i32
    %c0_i32_0 = arith.constant 0 : i32
    %c0_i32_1 = arith.constant 0 : i32
    return %c0_i32, %c0_i32_0 : i32, i32
  }
  func.func @transform_6(%arg0: i32) -> (i32, i32) {
    %c0_i32 = arith.constant 0 : i32
    %c0_i32_0 = arith.constant 0 : i32
    %c0_i32_1 = arith.constant 0 : i32
    return %c0_i32, %c0_i32_0 : i32, i32
  }
  func.func @transform_7(%arg0: i32) -> (i32, i32) {
    %c0_i32 = arith.constant 0 : i32
    %c0_i32_0 = arith.constant 0 : i32
    %c0_i32_1 = arith.constant 0 : i32
    return %c0_i32, %c0_i32_0 : i32, i32
  }
  func.func @transform_8(%arg0: i32) -> (i32, i32) {
    %c0_i32 = arith.constant 0 : i32
    %c0_i32_0 = arith.constant 0 : i32
    %c0_i32_1 = arith.constant 0 : i32
    return %c0_i32, %c0_i32_0 : i32, i32
  }
  func.func @transform_9(%arg0: i32) -> (i32, i32) {
    %c0_i32 = arith.constant 0 : i32
    %c0_i32_0 = arith.constant 0 : i32
    %c0_i32_1 = arith.constant 0 : i32
    return %c0_i32, %c0_i32_0 : i32, i32
  }
  func.func @transform_10(%arg0: i32) -> (i32, i32) {
    %c0_i32 = arith.constant 0 : i32
    %c0_i32_0 = arith.constant 0 : i32
    %c0_i32_1 = arith.constant 0 : i32
    return %c0_i32, %c0_i32_0 : i32, i32
  }
  func.func @transform_11(%arg0: i32) -> (i32, i32) {
    %c0_i32 = arith.constant 0 : i32
    %c0_i32_0 = arith.constant 0 : i32
    %c0_i32_1 = arith.constant 0 : i32
    return %c0_i32, %c0_i32_0 : i32, i32
  }
  func.func @transform_12(%arg0: i32) -> (i32, i32) {
    %c0_i32 = arith.constant 0 : i32
    %c0_i32_0 = arith.constant 0 : i32
    %c0_i32_1 = arith.constant 0 : i32
    return %c0_i32, %c0_i32_0 : i32, i32
  }
  func.func @transform_13(%arg0: i32) -> (i32, i32) {
    %c0_i32 = arith.constant 0 : i32
    %c0_i32_0 = arith.constant 0 : i32
    %c0_i32_1 = arith.constant 0 : i32
    return %c0_i32, %c0_i32_0 : i32, i32
  }
  func.func @transform_14(%arg0: i32) -> (i32, i32) {
    %c0_i32 = arith.constant 0 : i32
    %c0_i32_0 = arith.constant 0 : i32
    %c0_i32_1 = arith.constant 0 : i32
    return %c0_i32, %c0_i32_0 : i32, i32
  }
  func.func @transform_15(%arg0: i32) -> (i32, i32) {
    %c0_i32 = arith.constant 0 : i32
    %c0_i32_0 = arith.constant 0 : i32
    %c0_i32_1 = arith.constant 0 : i32
    return %c0_i32, %c0_i32_0 : i32, i32
  }
  func.func @transform_16(%arg0: i32) -> (i32, i32) {
    %c0_i32 = arith.constant 0 : i32
    %c0_i32_0 = arith.constant 0 : i32
    %c0_i32_1 = arith.constant 0 : i32
    return %c0_i32, %c0_i32_0 : i32, i32
  }
  func.func @transform_17(%arg0: i32) -> (i32, i32) {
    %c0_i32 = arith.constant 0 : i32
    %c0_i32_0 = arith.constant 0 : i32
    return %arg0, %c0_i32 : i32, i32
  }
}

</mosaic_0001>

<llo_original>
// kernel: tpu_custom_call.1
$region0: #{tpu_custom_call.1}
  #allocation0 [shape = 'u32[]', space=smem, size = 0x4, offset = 0x4, fixed_abs, tag = 'smem constant byte address 0x4 - core index']
  #allocation1 [shape = 'u32[144,128]{1,0:T(1,128)}', space=vmem, size = 0x12000, scoped, tag = 'internal scratch']
  %s0 = inlined_call_operand.hbm [shape: f32[16,128], index: 0, kind: input, shape index: {}]
  %s1 = inlined_call_operand.vmem [shape: f32[1,128], index: 1, kind: input, shape index: {}]
  %s2 = inlined_call_operand.vmem [shape: f32[1,128], index: 2, kind: input, shape index: {}]
  %s3 = inlined_call_operand.hbm [shape: f32[128,128], index: 3, kind: input, shape index: {}]
  %s4 = inlined_call_operand.vmem [shape: f32[1,128], index: 4, kind: input, shape index: {}]
  %s5 = inlined_call_operand.hbm [shape: f32[128,128], index: 5, kind: input, shape index: {}]
  %s6 = inlined_call_operand.vmem [shape: f32[1,128], index: 6, kind: input, shape index: {}]
  %s7 = inlined_call_operand.hbm [shape: f32[128,128], index: 7, kind: input, shape index: {}]
  %s8 = inlined_call_operand.vmem [shape: f32[1,128], index: 8, kind: input, shape index: {}]
  %s9 = inlined_call_operand.hbm [shape: f32[128,128], index: 9, kind: input, shape index: {}]
  %s10 = inlined_call_operand.vmem [shape: f32[1,128], index: 10, kind: input, shape index: {}]
  %s11 = inlined_call_operand.vmem [shape: f32[1,128], index: 11, kind: input, shape index: {}]
  %s12 = inlined_call_operand.vmem [shape: f32[1,128], index: 12, kind: input, shape index: {}]
  %s13 = inlined_call_operand.hbm [shape: f32[128,128], index: 13, kind: input, shape index: {}]
  %s14 = inlined_call_operand.vmem [shape: f32[1,128], index: 14, kind: input, shape index: {}]
  %s15 = inlined_call_operand.hbm [shape: f32[128,128], index: 15, kind: input, shape index: {}]
  %s16 = inlined_call_operand.vmem [shape: f32[1,128], index: 16, kind: input, shape index: {}]
  %s17 = inlined_call_operand.hbm [shape: f32[16,128], index: 17, kind: output, shape index: {}]
  %s18 = sld [smem:[#allocation0]]
  $region106: #{tpu_custom_call.1} parent=0
    _
  %s20 = ssub.s32 1, %s18
  %s21 = scalar_select 0, %s20, %s18
  $region1: #{tpu_custom_call.1} parent=0
    #allocation2 [shape = 'u8[8192]{0}', space=vmem, size = 0x2000, scoped, tag = 'input window, operand 0, single buffered']
    #allocation3 [shape = 's32[1]{0}', space=sflag, size = 0x4, scoped, tag = 'scoped memory for tpu_custom_call.1']
    #allocation4 [shape = 's32[1]{0}', space=sflag, size = 0x4, scoped, tag = 'scoped memory for tpu_custom_call.1']
    #allocation5 [shape = 'u8[65536]{0}', space=vmem, size = 0x10000, scoped, tag = 'input window, operand 3, single buffered']
    #allocation6 [shape = 's32[1]{0}', space=sflag, size = 0x4, scoped, tag = 'scoped memory for tpu_custom_call.1']
    #allocation7 [shape = 'u8[65536]{0}', space=vmem, size = 0x10000, scoped, tag = 'input window, operand 5, single buffered']
    #allocation8 [shape = 'u8[65536]{0}', space=vmem, size = 0x10000, scoped, tag = 'input window, operand 7, single buffered']
    #allocation9 [shape = 's32[1]{0}', space=sflag, size = 0x4, scoped, tag = 'scoped memory for tpu_custom_call.1']
    #allocation10 [shape = 'u8[65536]{0}', space=vmem, size = 0x10000, scoped, tag = 'input window, operand 9, single buffered']
    #allocation11 [shape = 'u8[65536]{0}', space=vmem, size = 0x10000, scoped, tag = 'input window, operand 13, single buffered']
    #allocation12 [shape = 's32[1]{0}', space=sflag, size = 0x4, scoped, tag = 'scoped memory for tpu_custom_call.1']
    #allocation13 [shape = 'u8[65536]{0}', space=vmem, size = 0x10000, scoped, tag = 'input window, operand 15, single buffered']
    #allocation14 [shape = 'u8[8192]{0}', space=vmem, size = 0x2000, scoped, tag = 'output window, operand 0, single buffered']
    %22 = vsyncpa [#allocation3], 0
    %23 = vsyncpa [#allocation6], 0
    %24 = vsyncpa [#allocation9], 0
    %25 = vsyncpa [#allocation12], 0
    %26 = vsyncpa [#allocation4], 0
    // Predicated region
    $region2: #{tpu_custom_call.1} parent=1 // pred_check
      _
    $region3: #{tpu_custom_call.1} parent=1 // pred_check_branch
      %28 = sbr.rel (0) target = $region5
    $region4: #{tpu_custom_call.1} parent=1 // pred_region
      %s30 = ssub.s32 256, 256
      %31 = vsyncadd [#allocation3], %s30
      %s32 = sshll.u32 [#allocation2], 4
      %s33 = int_to_ptr.vmem [resolvable:$true] %s32
      %38 = dma.hbm_to_vmem [thread:$0]  %s0, 256, %s33, [#allocation3], 128, 128, 8
    $region5: #{tpu_custom_call.1} parent=1 // pred_fallthru
      _
    // Predicated region
    $region6: #{tpu_custom_call.1} parent=1 // pred_check
      _
    $region7: #{tpu_custom_call.1} parent=1 // pred_check_branch
      %40 = sbr.rel (0) target = $region9
    $region8: #{tpu_custom_call.1} parent=1 // pred_region
      _
    $region9: #{tpu_custom_call.1} parent=1 // pred_fallthru
      _
    // Predicated region
    $region10: #{tpu_custom_call.1} parent=1 // pred_check
      _
    $region11: #{tpu_custom_call.1} parent=1 // pred_check_branch
      %42 = sbr.rel (0) target = $region13
    $region12: #{tpu_custom_call.1} parent=1 // pred_region
      _
    $region13: #{tpu_custom_call.1} parent=1 // pred_fallthru
      _
    // Predicated region
    $region14: #{tpu_custom_call.1} parent=1 // pred_check
      _
    $region15: #{tpu_custom_call.1} parent=1 // pred_check_branch
      %44 = sbr.rel (0) target = $region17
    $region16: #{tpu_custom_call.1} parent=1 // pred_region
      %s46 = ssub.s32 2048, 2048
      %47 = vsyncadd [#allocation6], %s46
      %s48 = sshll.u32 [#allocation5], 4
      %s49 = int_to_ptr.vmem [resolvable:$true] %s48
      %54 = dma.hbm_to_vmem [thread:$0]  %s3, 2048, %s49, [#allocation6], 128, 128, 8
    $region17: #{tpu_custom_call.1} parent=1 // pred_fallthru
      _
    // Predicated region
    $region18: #{tpu_custom_call.1} parent=1 // pred_check
      _
    $region19: #{tpu_custom_call.1} parent=1 // pred_check_branch
      %56 = sbr.rel (0) target = $region21
    $region20: #{tpu_custom_call.1} parent=1 // pred_region
      _
    $region21: #{tpu_custom_call.1} parent=1 // pred_fallthru
      _
    // Predicated region
    $region22: #{tpu_custom_call.1} parent=1 // pred_check
      _
    $region23: #{tpu_custom_call.1} parent=1 // pred_check_branch
      %58 = sbr.rel (0) target = $region25
    $region24: #{tpu_custom_call.1} parent=1 // pred_region
      %s60 = ssub.s32 2048, 2048
      %61 = vsyncadd [#allocation6], %s60
      %s62 = sshll.u32 [#allocation7], 4
      %s63 = int_to_ptr.vmem [resolvable:$true] %s62
      %68 = dma.hbm_to_vmem [thread:$0]  %s5, 2048, %s63, [#allocation6], 128, 128, 8
    $region25: #{tpu_custom_call.1} parent=1 // pred_fallthru
      _
    // Predicated region
    $region26: #{tpu_custom_call.1} parent=1 // pred_check
      _
    $region27: #{tpu_custom_call.1} parent=1 // pred_check_branch
      %70 = sbr.rel (0) target = $region29
    $region28: #{tpu_custom_call.1} parent=1 // pred_region
      _
    $region29: #{tpu_custom_call.1} parent=1 // pred_fallthru
      _
    // Predicated region
    $region30: #{tpu_custom_call.1} parent=1 // pred_check
      _
    $region31: #{tpu_custom_call.1} parent=1 // pred_check_branch
      %72 = sbr.rel (0) target = $region33
    $region32: #{tpu_custom_call.1} parent=1 // pred_region
      %s74 = ssub.s32 2048, 2048
      %75 = vsyncadd [#allocation9], %s74
      %s76 = sshll.u32 [#allocation8], 4
      %s77 = int_to_ptr.vmem [resolvable:$true] %s76
      %82 = dma.hbm_to_vmem [thread:$0]  %s7, 2048, %s77, [#allocation9], 128, 128, 8
    $region33: #{tpu_custom_call.1} parent=1 // pred_fallthru
      _
    // Predicated region
    $region34: #{tpu_custom_call.1} parent=1 // pred_check
      _
    $region35: #{tpu_custom_call.1} parent=1 // pred_check_branch
      %84 = sbr.rel (0) target = $region37
    $region36: #{tpu_custom_call.1} parent=1 // pred_region
      _
    $region37: #{tpu_custom_call.1} parent=1 // pred_fallthru
      _
    // Predicated region
    $region38: #{tpu_custom_call.1} parent=1 // pred_check
      _
    $region39: #{tpu_custom_call.1} parent=1 // pred_check_branch
      %86 = sbr.rel (0) target = $region41
    $region40: #{tpu_custom_call.1} parent=1 // pred_region
      %s88 = ssub.s32 2048, 2048
      %89 = vsyncadd [#allocation9], %s88
      %s90 = sshll.u32 [#allocation10], 4
      %s91 = int_to_ptr.vmem [resolvable:$true] %s90
      %96 = dma.hbm_to_vmem [thread:$0]  %s9, 2048, %s91, [#allocation9], 128, 128, 8
    $region41: #{tpu_custom_call.1} parent=1 // pred_fallthru
      _
    // Predicated region
    $region42: #{tpu_custom_call.1} parent=1 // pred_check
      _
    $region43: #{tpu_custom_call.1} parent=1 // pred_check_branch
      %98 = sbr.rel (0) target = $region45
    $region44: #{tpu_custom_call.1} parent=1 // pred_region
      _
    $region45: #{tpu_custom_call.1} parent=1 // pred_fallthru
      _
    // Predicated region
    $region46: #{tpu_custom_call.1} parent=1 // pred_check
      _
    $region47: #{tpu_custom_call.1} parent=1 // pred_check_branch
      %100 = sbr.rel (0) target = $region49
    $region48: #{tpu_custom_call.1} parent=1 // pred_region
      _
    $region49: #{tpu_custom_call.1} parent=1 // pred_fallthru
      _
    // Predicated region
    $region50: #{tpu_custom_call.1} parent=1 // pred_check
      _
    $region51: #{tpu_custom_call.1} parent=1 // pred_check_branch
      %102 = sbr.rel (0) target = $region53
    $region52: #{tpu_custom_call.1} parent=1 // pred_region
      _
    $region53: #{tpu_custom_call.1} parent=1 // pred_fallthru
      _
    // Predicated region
    $region54: #{tpu_custom_call.1} parent=1 // pred_check
      _
    $region55: #{tpu_custom_call.1} parent=1 // pred_check_branch
      %104 = sbr.rel (0) target = $region57
    $region56: #{tpu_custom_call.1} parent=1 // pred_region
      %s106 = ssub.s32 2048, 2048
      %107 = vsyncadd [#allocation12], %s106
      %s108 = sshll.u32 [#allocation11], 4
      %s109 = int_to_ptr.vmem [resolvable:$true] %s108
      %114 = dma.hbm_to_vmem [thread:$0]  %s13, 2048, %s109, [#allocation12], 128, 128, 8
    $region57: #{tpu_custom_call.1} parent=1 // pred_fallthru
      _
    // Predicated region
    $region58: #{tpu_custom_call.1} parent=1 // pred_check
      _
    $region59: #{tpu_custom_call.1} parent=1 // pred_check_branch
      %116 = sbr.rel (0) target = $region61
    $region60: #{tpu_custom_call.1} parent=1 // pred_region
      _
    $region61: #{tpu_custom_call.1} parent=1 // pred_fallthru
      _
    // Predicated region
    $region62: #{tpu_custom_call.1} parent=1 // pred_check
      _
    $region63: #{tpu_custom_call.1} parent=1 // pred_check_branch
      %118 = sbr.rel (0) target = $region65
    $region64: #{tpu_custom_call.1} parent=1 // pred_region
      %s120 = ssub.s32 2048, 2048
      %121 = vsyncadd [#allocation12], %s120
      %s122 = sshll.u32 [#allocation13], 4
      %s123 = int_to_ptr.vmem [resolvable:$true] %s122
      %128 = dma.hbm_to_vmem [thread:$0]  %s15, 2048, %s123, [#allocation12], 128, 128, 8
    $region65: #{tpu_custom_call.1} parent=1 // pred_fallthru
      _
    // Predicated region
    $region66: #{tpu_custom_call.1} parent=1 // pred_check
      _
    $region67: #{tpu_custom_call.1} parent=1 // pred_check_branch
      %130 = sbr.rel (0) target = $region69
    $region68: #{tpu_custom_call.1} parent=1 // pred_region
      _
    $region69: #{tpu_custom_call.1} parent=1 // pred_fallthru
      _
    // Predicated region
    $region70: #{tpu_custom_call.1} parent=1 // pred_check
      _
    $region71: #{tpu_custom_call.1} parent=1 // pred_check_branch
      %132 = sbr.rel (0) target = $region73
    $region72: #{tpu_custom_call.1} parent=1 // pred_region
      %133 = dma.done [#allocation3], 256
    $region73: #{tpu_custom_call.1} parent=1 // pred_fallthru
      _
    // Predicated region
    $region74: #{tpu_custom_call.1} parent=1 // pred_check
      _
    $region75: #{tpu_custom_call.1} parent=1 // pred_check_branch
      %135 = sbr.rel (0) target = $region77
    $region76: #{tpu_custom_call.1} parent=1 // pred_region
      %136 = dma.done [#allocation6], 2048
    $region77: #{tpu_custom_call.1} parent=1 // pred_fallthru
      _
    // Predicated region
    $region78: #{tpu_custom_call.1} parent=1 // pred_check
      _
    $region79: #{tpu_custom_call.1} parent=1 // pred_check_branch
      %138 = sbr.rel (0) target = $region81
    $region80: #{tpu_custom_call.1} parent=1 // pred_region
      %139 = dma.done [#allocation6], 2048
    $region81: #{tpu_custom_call.1} parent=1 // pred_fallthru
      _
    // Predicated region
    $region82: #{tpu_custom_call.1} parent=1 // pred_check
      _
    $region83: #{tpu_custom_call.1} parent=1 // pred_check_branch
      %141 = sbr.rel (0) target = $region85
    $region84: #{tpu_custom_call.1} parent=1 // pred_region
      %142 = dma.done [#allocation9], 2048
    $region85: #{tpu_custom_call.1} parent=1 // pred_fallthru
      _
    // Predicated region
    $region86: #{tpu_custom_call.1} parent=1 // pred_check
      _
    $region87: #{tpu_custom_call.1} parent=1 // pred_check_branch
      %144 = sbr.rel (0) target = $region89
    $region88: #{tpu_custom_call.1} parent=1 // pred_region
      %145 = dma.done [#allocation9], 2048
    $region89: #{tpu_custom_call.1} parent=1 // pred_fallthru
      _
    // Predicated region
    $region90: #{tpu_custom_call.1} parent=1 // pred_check
      _
    $region91: #{tpu_custom_call.1} parent=1 // pred_check_branch
      %147 = sbr.rel (0) target = $region93
    $region92: #{tpu_custom_call.1} parent=1 // pred_region
      %148 = dma.done [#allocation12], 2048
    $region93: #{tpu_custom_call.1} parent=1 // pred_fallthru
      _
    // Predicated region
    $region94: #{tpu_custom_call.1} parent=1 // pred_check
      _
    $region95: #{tpu_custom_call.1} parent=1 // pred_check_branch
      %150 = sbr.rel (0) target = $region97
    $region96: #{tpu_custom_call.1} parent=1 // pred_region
      %151 = dma.done [#allocation12], 2048
    $region97: #{tpu_custom_call.1} parent=1 // pred_fallthru
      _
    %v152 = vld [vmem:[#allocation2] sm:$0xff]
    %v153 = vld [vmem:[#allocation2 + $0x8] sm:$0xff]
    %v154 = vld [vmem:[%s1] sm:$0x1]
    %v155 = vld [vmem:[%s2] sm:$0x1]
    %156 = vadd.xlane.f32.xlu0 %v152
    %v157 = vpop.xlane.xlu0 %156
    %158 = vadd.xlane.f32.xlu0 %v153
    %v159 = vpop.xlane.xlu0 %158
    %v160 = vmul.f32 %v152, %v152
    %v161 = vmul.f32 %v153, %v153
    %162 = vadd.xlane.f32.xlu0 %v160
    %v163 = vpop.xlane.xlu0 %162
    %164 = vadd.xlane.f32.xlu0 %v161
    %v165 = vpop.xlane.xlu0 %164
    %v166 = vmul.f32 %v157, 0.03125
    %v167 = vmul.f32 %v159, 0.03125
    %v168 = vmul.f32 %v163, 0.03125
    %v169 = vmul.f32 %v165, 0.03125
    %v170 = vmul.f32 %v166, %v166
    %v171 = vmul.f32 %v167, %v167
    %v172 = vsub.f32 %v168, %v170
    %v173 = vsub.f32 %v169, %v171
    %v174 = vsub.f32 %v152, %v166
    %v175 = vsub.f32 %v153, %v167
    %v176 = vadd.f32 %v172, 1e-05
    %v177 = vadd.f32 %v173, 1e-05
    %v178 = vrsqrt.pop %v176
    %v179 = vrsqrt.pop %v177
    %v180 = vmul.f32 %v174, %v178
    %v181 = vmul.f32 %v175, %v179
    %v183 = vlaneseq
    %v184 = vshrl.u32 %v183, 7
    %v185 = vsub.s32 0, %v184
    %v186 = vrot.slane %v154, %v185
    %v188 = vmul.f32 %v180, %v186
    %v189 = vmul.f32 %v181, %v186
    %v191 = vlaneseq
    %v192 = vshrl.u32 %v191, 7
    %v193 = vsub.s32 0, %v192
    %v194 = vrot.slane %v155, %v193
    %v196 = vadd.f32 %v188, %v194
    %v197 = vadd.f32 %v189, %v194
    %v198 = vld [vmem:[#allocation5] sm:$0xff]
    %v199 = vld [vmem:[#allocation5 + $0x8] sm:$0xff]
    %v200 = vld [vmem:[#allocation5 + $0x10] sm:$0xff]
    %v201 = vld [vmem:[#allocation5 + $0x18] sm:$0xff]
    %v202 = vld [vmem:[#allocation5 + $0x20] sm:$0xff]
    %v203 = vld [vmem:[#allocation5 + $0x28] sm:$0xff]
    %v204 = vld [vmem:[#allocation5 + $0x30] sm:$0xff]
    %v205 = vld [vmem:[#allocation5 + $0x38] sm:$0xff]
    %v206 = vld [vmem:[#allocation5 + $0x40] sm:$0xff]
    %v207 = vld [vmem:[#allocation5 + $0x48] sm:$0xff]
    %v208 = vld [vmem:[#allocation5 + $0x50] sm:$0xff]
    %v209 = vld [vmem:[#allocation5 + $0x58] sm:$0xff]
    %v210 = vld [vmem:[#allocation5 + $0x60] sm:$0xff]
    %v211 = vld [vmem:[#allocation5 + $0x68] sm:$0xff]
    %v212 = vld [vmem:[#allocation5 + $0x70] sm:$0xff]
    %v213 = vld [vmem:[#allocation5 + $0x78] sm:$0xff]
    %v214 = vld [vmem:[%s4] sm:$0x1]
    %v216 = vlaneseq
    %v217 = vshrl.u32 %v216, 7
    %v218 = vsub.s32 0, %v217
    %v219 = vrot.slane %v214, %v218
    %221 = vmatprep.subr.mxu0 0.0
    %222 = vmatpush1.msra.mxu0 %v213
    %223 = vmatprep.subr.mxu0 0.0
    %224 = vmatpush1.msra.mxu0 %v212
    %225 = vmatprep.subr.mxu0 0.0
    %226 = vmatpush1.msra.mxu0 %v211
    %227 = vmatprep.subr.mxu0 0.0
    %228 = vmatpush1.msra.mxu0 %v210
    %229 = vmatprep.subr.mxu0 0.0
    %230 = vmatpush1.msra.mxu0 %v209
    %231 = vmatprep.subr.mxu0 0.0
    %232 = vmatpush1.msra.mxu0 %v208
    %233 = vmatprep.subr.mxu0 0.0
    %234 = vmatpush1.msra.mxu0 %v207
    %235 = vmatprep.subr.mxu0 0.0
    %236 = vmatpush1.msra.mxu0 %v206
    %237 = vmatprep.subr.mxu0 0.0
    %238 = vmatpush1.msra.mxu0 %v205
    %239 = vmatprep.subr.mxu0 0.0
    %240 = vmatpush1.msra.mxu0 %v204
    %241 = vmatprep.subr.mxu0 0.0
    %242 = vmatpush1.msra.mxu0 %v203
    %243 = vmatprep.subr.mxu0 0.0
    %244 = vmatpush1.msra.mxu0 %v202
    %245 = vmatprep.subr.mxu0 0.0
    %246 = vmatpush1.msra.mxu0 %v201
    %247 = vmatprep.subr.mxu0 0.0
    %248 = vmatpush1.msra.mxu0 %v200
    %249 = vmatprep.subr.mxu0 0.0
    %250 = vmatpush1.msra.mxu0 %v199
    %251 = vmatprep.subr.mxu0 0.0
    %252 = vmatpush1.msra.mxu0 %v198
    %253 = vmatprep.subr.mxu0 0.0
    %254 = vmatpush2.msra.mxu0 0.0
    %255 = vmatprep.subr.mxu0 0.0
    %256 = vmatpush2.msra.mxu0 0.0
    %257 = vmatprep.subr.mxu0 0.0
    %258 = vmatpush2.msra.mxu0 0.0
    %259 = vmatprep.subr.mxu0 0.0
    %260 = vmatpush2.msra.mxu0 0.0
    %261 = vmatprep.subr.mxu0 0.0
    %262 = vmatpush2.msra.mxu0 0.0
    %263 = vmatprep.subr.mxu0 0.0
    %264 = vmatpush2.msra.mxu0 0.0
    %265 = vmatprep.subr.mxu0 0.0
    %266 = vmatpush2.msra.mxu0 0.0
    %267 = vmatprep.subr.mxu0 0.0
    %268 = vmatpush2.msra.mxu0 0.0
    %269 = vmatprep.subr.mxu0 0.0
    %270 = vmatpush2.msra.mxu0 0.0
    %271 = vmatprep.subr.mxu0 0.0
    %272 = vmatpush2.msra.mxu0 0.0
    %273 = vmatprep.subr.mxu0 0.0
    %274 = vmatpush2.msra.mxu0 0.0
    %275 = vmatprep.subr.mxu0 0.0
    %276 = vmatpush2.msra.mxu0 0.0
    %277 = vmatprep.subr.mxu0 0.0
    %278 = vmatpush2.msra.mxu0 0.0
    %279 = vmatprep.subr.mxu0 0.0
    %280 = vmatpush2.msra.mxu0 0.0
    %281 = vmatprep.subr.mxu0 0.0
    %282 = vmatpush2.msra.mxu0 0.0
    %283 = vmatprep.subr.mxu0 0.0
    %284 = vmatpush2.msra.mxu0 0.0
    %285 = vmatprep.mubr.f32.mxu0 0.0
    %286 = vmatmul.mubr.f32.gmra.mxu0 %v196
    %v287 = vpop.f32.mrf.mxu0
    %v288 = vadd.f32 %v219, %v287
    %v289 = vpop.f32.mrf.mxu0
    %290 = vmatprep.mubr.f32.mxu0 0.0
    %291 = vmatmul.mubr.f32.gmra.mxu0 %v197
    %v292 = vpop.f32.mrf.mxu0
    %v293 = vadd.f32 %v219, %v292
    %v294 = vpop.f32.mrf.mxu0
    %295 = vdwg.mxu0
    %v296 = vld [vmem:[#allocation7] sm:$0xff]
    %v297 = vld [vmem:[#allocation7 + $0x8] sm:$0xff]
    %v298 = vld [vmem:[#allocation7 + $0x10] sm:$0xff]
    %v299 = vld [vmem:[#allocation7 + $0x18] sm:$0xff]
    %v300 = vld [vmem:[#allocation7 + $0x20] sm:$0xff]
    %v301 = vld [vmem:[#allocation7 + $0x28] sm:$0xff]
    %v302 = vld [vmem:[#allocation7 + $0x30] sm:$0xff]
    %v303 = vld [vmem:[#allocation7 + $0x38] sm:$0xff]
    %v304 = vld [vmem:[#allocation7 + $0x40] sm:$0xff]
    %v305 = vld [vmem:[#allocation7 + $0x48] sm:$0xff]
    %v306 = vld [vmem:[#allocation7 + $0x50] sm:$0xff]
    %v307 = vld [vmem:[#allocation7 + $0x58] sm:$0xff]
    %v308 = vld [vmem:[#allocation7 + $0x60] sm:$0xff]
    %v309 = vld [vmem:[#allocation7 + $0x68] sm:$0xff]
    %v310 = vld [vmem:[#allocation7 + $0x70] sm:$0xff]
    %v311 = vld [vmem:[#allocation7 + $0x78] sm:$0xff]
    %v312 = vld [vmem:[%s6] sm:$0x1]
    %v314 = vlaneseq
    %v315 = vshrl.u32 %v314, 7
    %v316 = vsub.s32 0, %v315
    %v317 = vrot.slane %v312, %v316
    %319 = vmatprep.subr.mxu0 0.0
    %320 = vmatpush1.msra.mxu0 %v311
    %321 = vmatprep.subr.mxu0 0.0
    %322 = vmatpush1.msra.mxu0 %v310
    %323 = vmatprep.subr.mxu0 0.0
    %324 = vmatpush1.msra.mxu0 %v309
    %325 = vmatprep.subr.mxu0 0.0
    %326 = vmatpush1.msra.mxu0 %v308
    %327 = vmatprep.subr.mxu0 0.0
    %328 = vmatpush1.msra.mxu0 %v307
    %329 = vmatprep.subr.mxu0 0.0
    %330 = vmatpush1.msra.mxu0 %v306
    %331 = vmatprep.subr.mxu0 0.0
    %332 = vmatpush1.msra.mxu0 %v305
    %333 = vmatprep.subr.mxu0 0.0
    %334 = vmatpush1.msra.mxu0 %v304
    %335 = vmatprep.subr.mxu0 0.0
    %336 = vmatpush1.msra.mxu0 %v303
    %337 = vmatprep.subr.mxu0 0.0
    %338 = vmatpush1.msra.mxu0 %v302
    %339 = vmatprep.subr.mxu0 0.0
    %340 = vmatpush1.msra.mxu0 %v301
    %341 = vmatprep.subr.mxu0 0.0
    %342 = vmatpush1.msra.mxu0 %v300
    %343 = vmatprep.subr.mxu0 0.0
    %344 = vmatpush1.msra.mxu0 %v299
    %345 = vmatprep.subr.mxu0 0.0
    %346 = vmatpush1.msra.mxu0 %v298
    %347 = vmatprep.subr.mxu0 0.0
    %348 = vmatpush1.msra.mxu0 %v297
    %349 = vmatprep.subr.mxu0 0.0
    %350 = vmatpush1.msra.mxu0 %v296
    %351 = vmatprep.subr.mxu0 0.0
    %352 = vmatpush2.msra.mxu0 0.0
    %353 = vmatprep.subr.mxu0 0.0
    %354 = vmatpush2.msra.mxu0 0.0
    %355 = vmatprep.subr.mxu0 0.0
    %356 = vmatpush2.msra.mxu0 0.0
    %357 = vmatprep.subr.mxu0 0.0
    %358 = vmatpush2.msra.mxu0 0.0
    %359 = vmatprep.subr.mxu0 0.0
    %360 = vmatpush2.msra.mxu0 0.0
    %361 = vmatprep.subr.mxu0 0.0
    %362 = vmatpush2.msra.mxu0 0.0
    %363 = vmatprep.subr.mxu0 0.0
    %364 = vmatpush2.msra.mxu0 0.0
    %365 = vmatprep.subr.mxu0 0.0
    %366 = vmatpush2.msra.mxu0 0.0
    %367 = vmatprep.subr.mxu0 0.0
    %368 = vmatpush2.msra.mxu0 0.0
    %369 = vmatprep.subr.mxu0 0.0
    %370 = vmatpush2.msra.mxu0 0.0
    %371 = vmatprep.subr.mxu0 0.0
    %372 = vmatpush2.msra.mxu0 0.0
    %373 = vmatprep.subr.mxu0 0.0
    %374 = vmatpush2.msra.mxu0 0.0
    %375 = vmatprep.subr.mxu0 0.0
    %376 = vmatpush2.msra.mxu0 0.0
    %377 = vmatprep.subr.mxu0 0.0
    %378 = vmatpush2.msra.mxu0 0.0
    %379 = vmatprep.subr.mxu0 0.0
    %380 = vmatpush2.msra.mxu0 0.0
    %381 = vmatprep.subr.mxu0 0.0
    %382 = vmatpush2.msra.mxu0 0.0
    %383 = vmatprep.mubr.f32.mxu0 0.0
    %384 = vmatmul.mubr.f32.gmra.mxu0 %v196
    %v385 = vpop.f32.mrf.mxu0
    %v386 = vadd.f32 %v317, %v385
    %v387 = vpop.f32.mrf.mxu0
    %388 = vmatprep.mubr.f32.mxu0 0.0
    %389 = vmatmul.mubr.f32.gmra.mxu0 %v197
    %v390 = vpop.f32.mrf.mxu0
    %v391 = vadd.f32 %v317, %v390
    %v392 = vpop.f32.mrf.mxu0
    %393 = vdwg.mxu0
    %v394 = vld [vmem:[#allocation8] sm:$0xff]
    %v395 = vld [vmem:[#allocation8 + $0x8] sm:$0xff]
    %v396 = vld [vmem:[#allocation8 + $0x10] sm:$0xff]
    %v397 = vld [vmem:[#allocation8 + $0x18] sm:$0xff]
    %v398 = vld [vmem:[#allocation8 + $0x20] sm:$0xff]
    %v399 = vld [vmem:[#allocation8 + $0x28] sm:$0xff]
    %v400 = vld [vmem:[#allocation8 + $0x30] sm:$0xff]
    %v401 = vld [vmem:[#allocation8 + $0x38] sm:$0xff]
    %v402 = vld [vmem:[#allocation8 + $0x40] sm:$0xff]
    %v403 = vld [vmem:[#allocation8 + $0x48] sm:$0xff]
    %v404 = vld [vmem:[#allocation8 + $0x50] sm:$0xff]
    %v405 = vld [vmem:[#allocation8 + $0x58] sm:$0xff]
    %v406 = vld [vmem:[#allocation8 + $0x60] sm:$0xff]
    %v407 = vld [vmem:[#allocation8 + $0x68] sm:$0xff]
    %v408 = vld [vmem:[#allocation8 + $0x70] sm:$0xff]
    %v409 = vld [vmem:[#allocation8 + $0x78] sm:$0xff]
    %v410 = vld [vmem:[%s8] sm:$0x1]
    %v412 = vlaneseq
    %v413 = vshrl.u32 %v412, 7
    %v414 = vsub.s32 0, %v413
    %v415 = vrot.slane %v410, %v414
    %417 = vmatprep.subr.mxu0 0.0
    %418 = vmatpush1.msra.mxu0 %v409
    %419 = vmatprep.subr.mxu0 0.0
    %420 = vmatpush1.msra.mxu0 %v408
    %421 = vmatprep.subr.mxu0 0.0
    %422 = vmatpush1.msra.mxu0 %v407
    %423 = vmatprep.subr.mxu0 0.0
    %424 = vmatpush1.msra.mxu0 %v406
    %425 = vmatprep.subr.mxu0 0.0
    %426 = vmatpush1.msra.mxu0 %v405
    %427 = vmatprep.subr.mxu0 0.0
    %428 = vmatpush1.msra.mxu0 %v404
    %429 = vmatprep.subr.mxu0 0.0
    %430 = vmatpush1.msra.mxu0 %v403
    %431 = vmatprep.subr.mxu0 0.0
    %432 = vmatpush1.msra.mxu0 %v402
    %433 = vmatprep.subr.mxu0 0.0
    %434 = vmatpush1.msra.mxu0 %v401
    %435 = vmatprep.subr.mxu0 0.0
    %436 = vmatpush1.msra.mxu0 %v400
    %437 = vmatprep.subr.mxu0 0.0
    %438 = vmatpush1.msra.mxu0 %v399
    %439 = vmatprep.subr.mxu0 0.0
    %440 = vmatpush1.msra.mxu0 %v398
    %441 = vmatprep.subr.mxu0 0.0
    %442 = vmatpush1.msra.mxu0 %v397
    %443 = vmatprep.subr.mxu0 0.0
    %444 = vmatpush1.msra.mxu0 %v396
    %445 = vmatprep.subr.mxu0 0.0
    %446 = vmatpush1.msra.mxu0 %v395
    %447 = vmatprep.subr.mxu0 0.0
    %448 = vmatpush1.msra.mxu0 %v394
    %449 = vmatprep.subr.mxu0 0.0
    %450 = vmatpush2.msra.mxu0 0.0
    %451 = vmatprep.subr.mxu0 0.0
    %452 = vmatpush2.msra.mxu0 0.0
    %453 = vmatprep.subr.mxu0 0.0
    %454 = vmatpush2.msra.mxu0 0.0
    %455 = vmatprep.subr.mxu0 0.0
    %456 = vmatpush2.msra.mxu0 0.0
    %457 = vmatprep.subr.mxu0 0.0
    %458 = vmatpush2.msra.mxu0 0.0
    %459 = vmatprep.subr.mxu0 0.0
    %460 = vmatpush2.msra.mxu0 0.0
    %461 = vmatprep.subr.mxu0 0.0
    %462 = vmatpush2.msra.mxu0 0.0
    %463 = vmatprep.subr.mxu0 0.0
    %464 = vmatpush2.msra.mxu0 0.0
    %465 = vmatprep.subr.mxu0 0.0
    %466 = vmatpush2.msra.mxu0 0.0
    %467 = vmatprep.subr.mxu0 0.0
    %468 = vmatpush2.msra.mxu0 0.0
    %469 = vmatprep.subr.mxu0 0.0
    %470 = vmatpush2.msra.mxu0 0.0
    %471 = vmatprep.subr.mxu0 0.0
    %472 = vmatpush2.msra.mxu0 0.0
    %473 = vmatprep.subr.mxu0 0.0
    %474 = vmatpush2.msra.mxu0 0.0
    %475 = vmatprep.subr.mxu0 0.0
    %476 = vmatpush2.msra.mxu0 0.0
    %477 = vmatprep.subr.mxu0 0.0
    %478 = vmatpush2.msra.mxu0 0.0
    %479 = vmatprep.subr.mxu0 0.0
    %480 = vmatpush2.msra.mxu0 0.0
    %481 = vmatprep.mubr.f32.mxu0 0.0
    %482 = vmatmul.mubr.f32.gmra.mxu0 %v196
    %v483 = vpop.f32.mrf.mxu0
    %v484 = vadd.f32 %v415, %v483
    %v485 = vpop.f32.mrf.mxu0
    %486 = vmatprep.mubr.f32.mxu0 0.0
    %487 = vmatmul.mubr.f32.gmra.mxu0 %v197
    %v488 = vpop.f32.mrf.mxu0
    %v489 = vadd.f32 %v415, %v488
    %v490 = vpop.f32.mrf.mxu0
    %491 = vdwg.mxu0
    %v492 = vlaneseq
    %v493 = vand.u32 %v492, 127
    %vm494 = vcmp.ge.s32.totalorder %v493, 0
    %vm495 = vcmp.lt.s32.totalorder %v493, 8
    %vm496 = vmand %vm494, %vm495
    %v497 = vsel %vm496, 1.0, 0.0
    %vm498 = vcmp.ge.s32.totalorder %v493, 8
    %vm499 = vcmp.lt.s32.totalorder %v493, 16
    %vm500 = vmand %vm498, %vm499
    %v501 = vsel %vm500, 1.0, 0.0
    %vm502 = vcmp.ge.s32.totalorder %v493, 16
    %vm503 = vcmp.lt.s32.totalorder %v493, 24
    %vm504 = vmand %vm502, %vm503
    %v505 = vsel %vm504, 1.0, 0.0
    %vm506 = vcmp.ge.s32.totalorder %v493, 24
    %vm507 = vcmp.lt.s32.totalorder %v493, 32
    %vm508 = vmand %vm506, %vm507
    %v509 = vsel %vm508, 1.0, 0.0
    %v510 = vmul.f32 %v386, %v497
    %511 = vmatprep.subr.mxu0 0.0
    %512 = vmatpush1.xpose.msra.mxu0 0.0
    %513 = vmatprep.subr.mxu0 0.0
    %514 = vmatpush1.xpose.msra.mxu0 0.0
    %515 = vmatprep.subr.mxu0 0.0
    %516 = vmatpush1.xpose.msra.mxu0 0.0
    %517 = vmatprep.subr.mxu0 0.0
    %518 = vmatpush1.xpose.msra.mxu0 0.0
    %519 = vmatprep.subr.mxu0 0.0
    %520 = vmatpush1.xpose.msra.mxu0 0.0
    %521 = vmatprep.subr.mxu0 0.0
    %522 = vmatpush1.xpose.msra.mxu0 0.0
    %523 = vmatprep.subr.mxu0 0.0
    %524 = vmatpush1.xpose.msra.mxu0 0.0
    %525 = vmatprep.subr.mxu0 0.0
    %526 = vmatpush1.xpose.msra.mxu0 0.0
    %527 = vmatprep.subr.mxu0 0.0
    %528 = vmatpush1.xpose.msra.mxu0 0.0
    %529 = vmatprep.subr.mxu0 0.0
    %530 = vmatpush1.xpose.msra.mxu0 0.0
    %531 = vmatprep.subr.mxu0 0.0
    %532 = vmatpush1.xpose.msra.mxu0 0.0
    %533 = vmatprep.subr.mxu0 0.0
    %534 = vmatpush1.xpose.msra.mxu0 0.0
    %535 = vmatprep.subr.mxu0 0.0
    %536 = vmatpush1.xpose.msra.mxu0 0.0
    %537 = vmatprep.subr.mxu0 0.0
    %538 = vmatpush1.xpose.msra.mxu0 0.0
    %539 = vmatprep.subr.mxu0 0.0
    %540 = vmatpush1.xpose.msra.mxu0 0.0
    %541 = vmatprep.subr.mxu0 0.0
    %542 = vmatpush1.xpose.msra.mxu0 %v510
    %543 = vmatprep.subr.mxu0 0.0
    %544 = vmatpush2.xpose.msra.mxu0 0.0
    %545 = vmatprep.subr.mxu0 0.0
    %546 = vmatpush2.xpose.msra.mxu0 0.0
    %547 = vmatprep.subr.mxu0 0.0
    %548 = vmatpush2.xpose.msra.mxu0 0.0
    %549 = vmatprep.subr.mxu0 0.0
    %550 = vmatpush2.xpose.msra.mxu0 0.0
    %551 = vmatprep.subr.mxu0 0.0
    %552 = vmatpush2.xpose.msra.mxu0 0.0
    %553 = vmatprep.subr.mxu0 0.0
    %554 = vmatpush2.xpose.msra.mxu0 0.0
    %555 = vmatprep.subr.mxu0 0.0
    %556 = vmatpush2.xpose.msra.mxu0 0.0
    %557 = vmatprep.subr.mxu0 0.0
    %558 = vmatpush2.xpose.msra.mxu0 0.0
    %559 = vmatprep.subr.mxu0 0.0
    %560 = vmatpush2.xpose.msra.mxu0 0.0
    %561 = vmatprep.subr.mxu0 0.0
    %562 = vmatpush2.xpose.msra.mxu0 0.0
    %563 = vmatprep.subr.mxu0 0.0
    %564 = vmatpush2.xpose.msra.mxu0 0.0
    %565 = vmatprep.subr.mxu0 0.0
    %566 = vmatpush2.xpose.msra.mxu0 0.0
    %567 = vmatprep.subr.mxu0 0.0
    %568 = vmatpush2.xpose.msra.mxu0 0.0
    %569 = vmatprep.subr.mxu0 0.0
    %570 = vmatpush2.xpose.msra.mxu0 0.0
    %571 = vmatprep.subr.mxu0 0.0
    %572 = vmatpush2.xpose.msra.mxu0 0.0
    %573 = vmatprep.subr.mxu0 0.0
    %574 = vmatpush2.xpose.msra.mxu0 0.0
    %575 = vmatprep.mubr.f32.mxu0 0.0
    %576 = vmatmul.mubr.f32.gmra.mxu0 %v288
    %v577 = vpop.f32.mrf.mxu0
    %v578 = vadd.f32 0.0, %v577
    %v579 = vpop.f32.mrf.mxu0
    %580 = vdwg.mxu0
    %vm581 = vcmask 64512
    %v582 = vsel %vm581, %v578, -inf
    %583 = vmax.xlane.f32.xlu0 %v582
    %v584 = vpop.xlane.xlu0 %583
    %v585 = vsub.f32 %v578, %v584
    %v586 = vmul.f32 %v585, 1.442695
    %v587 = vpow.pop %v586
    %v588 = vsel %vm581, %v587, 0.0
    %589 = vadd.xlane.f32.xlu0 %v588
    %v590 = vpop.xlane.xlu0 %589
    %v591 = vrcp.pop %v590
    %v592 = vmul.f32 %v587, %v591
    %v593 = vmul.f32 %v484, %v497
    %v594 = vmul.f32 %v386, %v501
    %595 = vmatprep.subr.mxu0 0.0
    %596 = vmatpush1.xpose.msra.mxu0 0.0
    %597 = vmatprep.subr.mxu0 0.0
    %598 = vmatpush1.xpose.msra.mxu0 0.0
    %599 = vmatprep.subr.mxu0 0.0
    %600 = vmatpush1.xpose.msra.mxu0 0.0
    %601 = vmatprep.subr.mxu0 0.0
    %602 = vmatpush1.xpose.msra.mxu0 0.0
    %603 = vmatprep.subr.mxu0 0.0
    %604 = vmatpush1.xpose.msra.mxu0 0.0
    %605 = vmatprep.subr.mxu0 0.0
    %606 = vmatpush1.xpose.msra.mxu0 0.0
    %607 = vmatprep.subr.mxu0 0.0
    %608 = vmatpush1.xpose.msra.mxu0 0.0
    %609 = vmatprep.subr.mxu0 0.0
    %610 = vmatpush1.xpose.msra.mxu0 0.0
    %611 = vmatprep.subr.mxu0 0.0
    %612 = vmatpush1.xpose.msra.mxu0 0.0
    %613 = vmatprep.subr.mxu0 0.0
    %614 = vmatpush1.xpose.msra.mxu0 0.0
    %615 = vmatprep.subr.mxu0 0.0
    %616 = vmatpush1.xpose.msra.mxu0 0.0
    %617 = vmatprep.subr.mxu0 0.0
    %618 = vmatpush1.xpose.msra.mxu0 0.0
    %619 = vmatprep.subr.mxu0 0.0
    %620 = vmatpush1.xpose.msra.mxu0 0.0
    %621 = vmatprep.subr.mxu0 0.0
    %622 = vmatpush1.xpose.msra.mxu0 0.0
    %623 = vmatprep.subr.mxu0 0.0
    %624 = vmatpush1.xpose.msra.mxu0 0.0
    %625 = vmatprep.subr.mxu0 0.0
    %626 = vmatpush1.xpose.msra.mxu0 %v594
    %627 = vmatprep.subr.mxu0 0.0
    %628 = vmatpush2.xpose.msra.mxu0 0.0
    %629 = vmatprep.subr.mxu0 0.0
    %630 = vmatpush2.xpose.msra.mxu0 0.0
    %631 = vmatprep.subr.mxu0 0.0
    %632 = vmatpush2.xpose.msra.mxu0 0.0
    %633 = vmatprep.subr.mxu0 0.0
    %634 = vmatpush2.xpose.msra.mxu0 0.0
    %635 = vmatprep.subr.mxu0 0.0
    %636 = vmatpush2.xpose.msra.mxu0 0.0
    %637 = vmatprep.subr.mxu0 0.0
    %638 = vmatpush2.xpose.msra.mxu0 0.0
    %639 = vmatprep.subr.mxu0 0.0
    %640 = vmatpush2.xpose.msra.mxu0 0.0
    %641 = vmatprep.subr.mxu0 0.0
    %642 = vmatpush2.xpose.msra.mxu0 0.0
    %643 = vmatprep.subr.mxu0 0.0
    %644 = vmatpush2.xpose.msra.mxu0 0.0
    %645 = vmatprep.subr.mxu0 0.0
    %646 = vmatpush2.xpose.msra.mxu0 0.0
    %647 = vmatprep.subr.mxu0 0.0
    %648 = vmatpush2.xpose.msra.mxu0 0.0
    %649 = vmatprep.subr.mxu0 0.0
    %650 = vmatpush2.xpose.msra.mxu0 0.0
    %651 = vmatprep.subr.mxu0 0.0
    %652 = vmatpush2.xpose.msra.mxu0 0.0
    %653 = vmatprep.subr.mxu0 0.0
    %654 = vmatpush2.xpose.msra.mxu0 0.0
    %655 = vmatprep.subr.mxu0 0.0
    %656 = vmatpush2.xpose.msra.mxu0 0.0
    %657 = vmatprep.subr.mxu0 0.0
    %658 = vmatpush2.xpose.msra.mxu0 0.0
    %659 = vmatprep.mubr.f32.mxu0 0.0
    %660 = vmatmul.mubr.f32.gmra.mxu0 %v288
    %v661 = vpop.f32.mrf.mxu0
    %v662 = vadd.f32 0.0, %v661
    %v663 = vpop.f32.mrf.mxu0
    %664 = vdwg.mxu0
    %v665 = vsel %vm581, %v662, -inf
    %666 = vmax.xlane.f32.xlu0 %v665
    %v667 = vpop.xlane.xlu0 %666
    %v668 = vsub.f32 %v662, %v667
    %v669 = vmul.f32 %v668, 1.442695
    %v670 = vpow.pop %v669
    %v671 = vsel %vm581, %v670, 0.0
    %672 = vadd.xlane.f32.xlu0 %v671
    %v673 = vpop.xlane.xlu0 %672
    %v674 = vrcp.pop %v673
    %v675 = vmul.f32 %v670, %v674
    %v676 = vmul.f32 %v484, %v501
    %v678 = vsel %vm581, %v675, 0
    %680 = vmatprep.subr.mxu0 0.0
    %681 = vmatpush1.msra.mxu0 0.0
    %682 = vmatprep.subr.mxu0 0.0
    %683 = vmatpush1.msra.mxu0 0.0
    %684 = vmatprep.subr.mxu0 0.0
    %685 = vmatpush1.msra.mxu0 0.0
    %686 = vmatprep.subr.mxu0 0.0
    %687 = vmatpush1.msra.mxu0 0.0
    %688 = vmatprep.subr.mxu0 0.0
    %689 = vmatpush1.msra.mxu0 0.0
    %690 = vmatprep.subr.mxu0 0.0
    %691 = vmatpush1.msra.mxu0 0.0
    %692 = vmatprep.subr.mxu0 0.0
    %693 = vmatpush1.msra.mxu0 0.0
    %694 = vmatprep.subr.mxu0 0.0
    %695 = vmatpush1.msra.mxu0 0.0
    %696 = vmatprep.subr.mxu0 0.0
    %697 = vmatpush1.msra.mxu0 0.0
    %698 = vmatprep.subr.mxu0 0.0
    %699 = vmatpush1.msra.mxu0 0.0
    %700 = vmatprep.subr.mxu0 0.0
    %701 = vmatpush1.msra.mxu0 0.0
    %702 = vmatprep.subr.mxu0 0.0
    %703 = vmatpush1.msra.mxu0 0.0
    %704 = vmatprep.subr.mxu0 0.0
    %705 = vmatpush1.msra.mxu0 0.0
    %706 = vmatprep.subr.mxu0 0.0
    %707 = vmatpush1.msra.mxu0 0.0
    %708 = vmatprep.subr.mxu0 0.0
    %709 = vmatpush1.msra.mxu0 0.0
    %710 = vmatprep.subr.mxu0 0.0
    %711 = vmatpush1.msra.mxu0 %v676
    %712 = vmatprep.subr.mxu0 0.0
    %713 = vmatpush2.msra.mxu0 0.0
    %714 = vmatprep.subr.mxu0 0.0
    %715 = vmatpush2.msra.mxu0 0.0
    %716 = vmatprep.subr.mxu0 0.0
    %717 = vmatpush2.msra.mxu0 0.0
    %718 = vmatprep.subr.mxu0 0.0
    %719 = vmatpush2.msra.mxu0 0.0
    %720 = vmatprep.subr.mxu0 0.0
    %721 = vmatpush2.msra.mxu0 0.0
    %722 = vmatprep.subr.mxu0 0.0
    %723 = vmatpush2.msra.mxu0 0.0
    %724 = vmatprep.subr.mxu0 0.0
    %725 = vmatpush2.msra.mxu0 0.0
    %726 = vmatprep.subr.mxu0 0.0
    %727 = vmatpush2.msra.mxu0 0.0
    %728 = vmatprep.subr.mxu0 0.0
    %729 = vmatpush2.msra.mxu0 0.0
    %730 = vmatprep.subr.mxu0 0.0
    %731 = vmatpush2.msra.mxu0 0.0
    %732 = vmatprep.subr.mxu0 0.0
    %733 = vmatpush2.msra.mxu0 0.0
    %734 = vmatprep.subr.mxu0 0.0
    %735 = vmatpush2.msra.mxu0 0.0
    %736 = vmatprep.subr.mxu0 0.0
    %737 = vmatpush2.msra.mxu0 0.0
    %738 = vmatprep.subr.mxu0 0.0
    %739 = vmatpush2.msra.mxu0 0.0
    %740 = vmatprep.subr.mxu0 0.0
    %741 = vmatpush2.msra.mxu0 0.0
    %742 = vmatprep.subr.mxu0 0.0
    %743 = vmatpush2.msra.mxu0 0.0
    %744 = vmatprep.mubr.f32.mxu0 0.0
    %745 = vmatmul.mubr.f32.gmra.mxu0 %v678
    %v746 = vpop.f32.mrf.mxu0
    %v747 = vadd.f32 0.0, %v746
    %v748 = vpop.f32.mrf.mxu0
    %749 = vdwg.mxu0
    %v751 = vsel %vm581, %v592, 0
    %753 = vmatprep.subr.mxu0 0.0
    %754 = vmatpush1.msra.mxu0 0.0
    %755 = vmatprep.subr.mxu0 0.0
    %756 = vmatpush1.msra.mxu0 0.0
    %757 = vmatprep.subr.mxu0 0.0
    %758 = vmatpush1.msra.mxu0 0.0
    %759 = vmatprep.subr.mxu0 0.0
    %760 = vmatpush1.msra.mxu0 0.0
    %761 = vmatprep.subr.mxu0 0.0
    %762 = vmatpush1.msra.mxu0 0.0
    %763 = vmatprep.subr.mxu0 0.0
    %764 = vmatpush1.msra.mxu0 0.0
    %765 = vmatprep.subr.mxu0 0.0
    %766 = vmatpush1.msra.mxu0 0.0
    %767 = vmatprep.subr.mxu0 0.0
    %768 = vmatpush1.msra.mxu0 0.0
    %769 = vmatprep.subr.mxu0 0.0
    %770 = vmatpush1.msra.mxu0 0.0
    %771 = vmatprep.subr.mxu0 0.0
    %772 = vmatpush1.msra.mxu0 0.0
    %773 = vmatprep.subr.mxu0 0.0
    %774 = vmatpush1.msra.mxu0 0.0
    %775 = vmatprep.subr.mxu0 0.0
    %776 = vmatpush1.msra.mxu0 0.0
    %777 = vmatprep.subr.mxu0 0.0
    %778 = vmatpush1.msra.mxu0 0.0
    %779 = vmatprep.subr.mxu0 0.0
    %780 = vmatpush1.msra.mxu0 0.0
    %781 = vmatprep.subr.mxu0 0.0
    %782 = vmatpush1.msra.mxu0 0.0
    %783 = vmatprep.subr.mxu0 0.0
    %784 = vmatpush1.msra.mxu0 %v593
    %785 = vmatprep.subr.mxu0 0.0
    %786 = vmatpush2.msra.mxu0 0.0
    %787 = vmatprep.subr.mxu0 0.0
    %788 = vmatpush2.msra.mxu0 0.0
    %789 = vmatprep.subr.mxu0 0.0
    %790 = vmatpush2.msra.mxu0 0.0
    %791 = vmatprep.subr.mxu0 0.0
    %792 = vmatpush2.msra.mxu0 0.0
    %793 = vmatprep.subr.mxu0 0.0
    %794 = vmatpush2.msra.mxu0 0.0
    %795 = vmatprep.subr.mxu0 0.0
    %796 = vmatpush2.msra.mxu0 0.0
    %797 = vmatprep.subr.mxu0 0.0
    %798 = vmatpush2.msra.mxu0 0.0
    %799 = vmatprep.subr.mxu0 0.0
    %800 = vmatpush2.msra.mxu0 0.0
    %801 = vmatprep.subr.mxu0 0.0
    %802 = vmatpush2.msra.mxu0 0.0
    %803 = vmatprep.subr.mxu0 0.0
    %804 = vmatpush2.msra.mxu0 0.0
    %805 = vmatprep.subr.mxu0 0.0
    %806 = vmatpush2.msra.mxu0 0.0
    %807 = vmatprep.subr.mxu0 0.0
    %808 = vmatpush2.msra.mxu0 0.0
    %809 = vmatprep.subr.mxu0 0.0
    %810 = vmatpush2.msra.mxu0 0.0
    %811 = vmatprep.subr.mxu0 0.0
    %812 = vmatpush2.msra.mxu0 0.0
    %813 = vmatprep.subr.mxu0 0.0
    %814 = vmatpush2.msra.mxu0 0.0
    %815 = vmatprep.subr.mxu0 0.0
    %816 = vmatpush2.msra.mxu0 0.0
    %817 = vmatprep.mubr.f32.mxu0 0.0
    %818 = vmatmul.mubr.f32.gmra.mxu0 %v751
    %v819 = vpop.f32.mrf.mxu0
    %v820 = vadd.f32 %v747, %v819
    %v821 = vpop.f32.mrf.mxu0
    %822 = vdwg.mxu0
    %v823 = vmul.f32 %v386, %v505
    %824 = vmatprep.subr.mxu0 0.0
    %825 = vmatpush1.xpose.msra.mxu0 0.0
    %826 = vmatprep.subr.mxu0 0.0
    %827 = vmatpush1.xpose.msra.mxu0 0.0
    %828 = vmatprep.subr.mxu0 0.0
    %829 = vmatpush1.xpose.msra.mxu0 0.0
    %830 = vmatprep.subr.mxu0 0.0
    %831 = vmatpush1.xpose.msra.mxu0 0.0
    %832 = vmatprep.subr.mxu0 0.0
    %833 = vmatpush1.xpose.msra.mxu0 0.0
    %834 = vmatprep.subr.mxu0 0.0
    %835 = vmatpush1.xpose.msra.mxu0 0.0
    %836 = vmatprep.subr.mxu0 0.0
    %837 = vmatpush1.xpose.msra.mxu0 0.0
    %838 = vmatprep.subr.mxu0 0.0
    %839 = vmatpush1.xpose.msra.mxu0 0.0
    %840 = vmatprep.subr.mxu0 0.0
    %841 = vmatpush1.xpose.msra.mxu0 0.0
    %842 = vmatprep.subr.mxu0 0.0
    %843 = vmatpush1.xpose.msra.mxu0 0.0
    %844 = vmatprep.subr.mxu0 0.0
    %845 = vmatpush1.xpose.msra.mxu0 0.0
    %846 = vmatprep.subr.mxu0 0.0
    %847 = vmatpush1.xpose.msra.mxu0 0.0
    %848 = vmatprep.subr.mxu0 0.0
    %849 = vmatpush1.xpose.msra.mxu0 0.0
    %850 = vmatprep.subr.mxu0 0.0
    %851 = vmatpush1.xpose.msra.mxu0 0.0
    %852 = vmatprep.subr.mxu0 0.0
    %853 = vmatpush1.xpose.msra.mxu0 0.0
    %854 = vmatprep.subr.mxu0 0.0
    %855 = vmatpush1.xpose.msra.mxu0 %v823
    %856 = vmatprep.subr.mxu0 0.0
    %857 = vmatpush2.xpose.msra.mxu0 0.0
    %858 = vmatprep.subr.mxu0 0.0
    %859 = vmatpush2.xpose.msra.mxu0 0.0
    %860 = vmatprep.subr.mxu0 0.0
    %861 = vmatpush2.xpose.msra.mxu0 0.0
    %862 = vmatprep.subr.mxu0 0.0
    %863 = vmatpush2.xpose.msra.mxu0 0.0
    %864 = vmatprep.subr.mxu0 0.0
    %865 = vmatpush2.xpose.msra.mxu0 0.0
    %866 = vmatprep.subr.mxu0 0.0
    %867 = vmatpush2.xpose.msra.mxu0 0.0
    %868 = vmatprep.subr.mxu0 0.0
    %869 = vmatpush2.xpose.msra.mxu0 0.0
    %870 = vmatprep.subr.mxu0 0.0
    %871 = vmatpush2.xpose.msra.mxu0 0.0
    %872 = vmatprep.subr.mxu0 0.0
    %873 = vmatpush2.xpose.msra.mxu0 0.0
    %874 = vmatprep.subr.mxu0 0.0
    %875 = vmatpush2.xpose.msra.mxu0 0.0
    %876 = vmatprep.subr.mxu0 0.0
    %877 = vmatpush2.xpose.msra.mxu0 0.0
    %878 = vmatprep.subr.mxu0 0.0
    %879 = vmatpush2.xpose.msra.mxu0 0.0
    %880 = vmatprep.subr.mxu0 0.0
    %881 = vmatpush2.xpose.msra.mxu0 0.0
    %882 = vmatprep.subr.mxu0 0.0
    %883 = vmatpush2.xpose.msra.mxu0 0.0
    %884 = vmatprep.subr.mxu0 0.0
    %885 = vmatpush2.xpose.msra.mxu0 0.0
    %886 = vmatprep.subr.mxu0 0.0
    %887 = vmatpush2.xpose.msra.mxu0 0.0
    %888 = vmatprep.mubr.f32.mxu0 0.0
    %889 = vmatmul.mubr.f32.gmra.mxu0 %v288
    %v890 = vpop.f32.mrf.mxu0
    %v891 = vadd.f32 0.0, %v890
    %v892 = vpop.f32.mrf.mxu0
    %893 = vdwg.mxu0
    %v894 = vsel %vm581, %v891, -inf
    %895 = vmax.xlane.f32.xlu0 %v894
    %v896 = vpop.xlane.xlu0 %895
    %v897 = vsub.f32 %v891, %v896
    %v898 = vmul.f32 %v897, 1.442695
    %v899 = vpow.pop %v898
    %v900 = vsel %vm581, %v899, 0.0
    %901 = vadd.xlane.f32.xlu0 %v900
    %v902 = vpop.xlane.xlu0 %901
    %v903 = vrcp.pop %v902
    %v904 = vmul.f32 %v899, %v903
    %v905 = vmul.f32 %v484, %v505
    %v907 = vsel %vm581, %v904, 0
    %909 = vmatprep.subr.mxu0 0.0
    %910 = vmatpush1.msra.mxu0 0.0
    %911 = vmatprep.subr.mxu0 0.0
    %912 = vmatpush1.msra.mxu0 0.0
    %913 = vmatprep.subr.mxu0 0.0
    %914 = vmatpush1.msra.mxu0 0.0
    %915 = vmatprep.subr.mxu0 0.0
    %916 = vmatpush1.msra.mxu0 0.0
    %917 = vmatprep.subr.mxu0 0.0
    %918 = vmatpush1.msra.mxu0 0.0
    %919 = vmatprep.subr.mxu0 0.0
    %920 = vmatpush1.msra.mxu0 0.0
    %921 = vmatprep.subr.mxu0 0.0
    %922 = vmatpush1.msra.mxu0 0.0
    %923 = vmatprep.subr.mxu0 0.0
    %924 = vmatpush1.msra.mxu0 0.0
    %925 = vmatprep.subr.mxu0 0.0
    %926 = vmatpush1.msra.mxu0 0.0
    %927 = vmatprep.subr.mxu0 0.0
    %928 = vmatpush1.msra.mxu0 0.0
    %929 = vmatprep.subr.mxu0 0.0
    %930 = vmatpush1.msra.mxu0 0.0
    %931 = vmatprep.subr.mxu0 0.0
    %932 = vmatpush1.msra.mxu0 0.0
    %933 = vmatprep.subr.mxu0 0.0
    %934 = vmatpush1.msra.mxu0 0.0
    %935 = vmatprep.subr.mxu0 0.0
    %936 = vmatpush1.msra.mxu0 0.0
    %937 = vmatprep.subr.mxu0 0.0
    %938 = vmatpush1.msra.mxu0 0.0
    %939 = vmatprep.subr.mxu0 0.0
    %940 = vmatpush1.msra.mxu0 %v905
    %941 = vmatprep.subr.mxu0 0.0
    %942 = vmatpush2.msra.mxu0 0.0
    %943 = vmatprep.subr.mxu0 0.0
    %944 = vmatpush2.msra.mxu0 0.0
    %945 = vmatprep.subr.mxu0 0.0
    %946 = vmatpush2.msra.mxu0 0.0
    %947 = vmatprep.subr.mxu0 0.0
    %948 = vmatpush2.msra.mxu0 0.0
    %949 = vmatprep.subr.mxu0 0.0
    %950 = vmatpush2.msra.mxu0 0.0
    %951 = vmatprep.subr.mxu0 0.0
    %952 = vmatpush2.msra.mxu0 0.0
    %953 = vmatprep.subr.mxu0 0.0
    %954 = vmatpush2.msra.mxu0 0.0
    %955 = vmatprep.subr.mxu0 0.0
    %956 = vmatpush2.msra.mxu0 0.0
    %957 = vmatprep.subr.mxu0 0.0
    %958 = vmatpush2.msra.mxu0 0.0
    %959 = vmatprep.subr.mxu0 0.0
    %960 = vmatpush2.msra.mxu0 0.0
    %961 = vmatprep.subr.mxu0 0.0
    %962 = vmatpush2.msra.mxu0 0.0
    %963 = vmatprep.subr.mxu0 0.0
    %964 = vmatpush2.msra.mxu0 0.0
    %965 = vmatprep.subr.mxu0 0.0
    %966 = vmatpush2.msra.mxu0 0.0
    %967 = vmatprep.subr.mxu0 0.0
    %968 = vmatpush2.msra.mxu0 0.0
    %969 = vmatprep.subr.mxu0 0.0
    %970 = vmatpush2.msra.mxu0 0.0
    %971 = vmatprep.subr.mxu0 0.0
    %972 = vmatpush2.msra.mxu0 0.0
    %973 = vmatprep.mubr.f32.mxu0 0.0
    %974 = vmatmul.mubr.f32.gmra.mxu0 %v907
    %v975 = vpop.f32.mrf.mxu0
    %v976 = vadd.f32 0.0, %v975
    %v977 = vpop.f32.mrf.mxu0
    %978 = vdwg.mxu0
    %v979 = vadd.f32 %v820, %v976
    %v980 = vmul.f32 %v386, %v509
    %981 = vmatprep.subr.mxu0 0.0
    %982 = vmatpush1.xpose.msra.mxu0 0.0
    %983 = vmatprep.subr.mxu0 0.0
    %984 = vmatpush1.xpose.msra.mxu0 0.0
    %985 = vmatprep.subr.mxu0 0.0
    %986 = vmatpush1.xpose.msra.mxu0 0.0
    %987 = vmatprep.subr.mxu0 0.0
    %988 = vmatpush1.xpose.msra.mxu0 0.0
    %989 = vmatprep.subr.mxu0 0.0
    %990 = vmatpush1.xpose.msra.mxu0 0.0
    %991 = vmatprep.subr.mxu0 0.0
    %992 = vmatpush1.xpose.msra.mxu0 0.0
    %993 = vmatprep.subr.mxu0 0.0
    %994 = vmatpush1.xpose.msra.mxu0 0.0
    %995 = vmatprep.subr.mxu0 0.0
    %996 = vmatpush1.xpose.msra.mxu0 0.0
    %997 = vmatprep.subr.mxu0 0.0
    %998 = vmatpush1.xpose.msra.mxu0 0.0
    %999 = vmatprep.subr.mxu0 0.0
    %1000 = vmatpush1.xpose.msra.mxu0 0.0
    %1001 = vmatprep.subr.mxu0 0.0
    %1002 = vmatpush1.xpose.msra.mxu0 0.0
    %1003 = vmatprep.subr.mxu0 0.0
    %1004 = vmatpush1.xpose.msra.mxu0 0.0
    %1005 = vmatprep.subr.mxu0 0.0
    %1006 = vmatpush1.xpose.msra.mxu0 0.0
    %1007 = vmatprep.subr.mxu0 0.0
    %1008 = vmatpush1.xpose.msra.mxu0 0.0
    %1009 = vmatprep.subr.mxu0 0.0
    %1010 = vmatpush1.xpose.msra.mxu0 0.0
    %1011 = vmatprep.subr.mxu0 0.0
    %1012 = vmatpush1.xpose.msra.mxu0 %v980
    %1013 = vmatprep.subr.mxu0 0.0
    %1014 = vmatpush2.xpose.msra.mxu0 0.0
    %1015 = vmatprep.subr.mxu0 0.0
    %1016 = vmatpush2.xpose.msra.mxu0 0.0
    %1017 = vmatprep.subr.mxu0 0.0
    %1018 = vmatpush2.xpose.msra.mxu0 0.0
    %1019 = vmatprep.subr.mxu0 0.0
    %1020 = vmatpush2.xpose.msra.mxu0 0.0
    %1021 = vmatprep.subr.mxu0 0.0
    %1022 = vmatpush2.xpose.msra.mxu0 0.0
    %1023 = vmatprep.subr.mxu0 0.0
    %1024 = vmatpush2.xpose.msra.mxu0 0.0
    %1025 = vmatprep.subr.mxu0 0.0
    %1026 = vmatpush2.xpose.msra.mxu0 0.0
    %1027 = vmatprep.subr.mxu0 0.0
    %1028 = vmatpush2.xpose.msra.mxu0 0.0
    %1029 = vmatprep.subr.mxu0 0.0
    %1030 = vmatpush2.xpose.msra.mxu0 0.0
    %1031 = vmatprep.subr.mxu0 0.0
    %1032 = vmatpush2.xpose.msra.mxu0 0.0
    %1033 = vmatprep.subr.mxu0 0.0
    %1034 = vmatpush2.xpose.msra.mxu0 0.0
    %1035 = vmatprep.subr.mxu0 0.0
    %1036 = vmatpush2.xpose.msra.mxu0 0.0
    %1037 = vmatprep.subr.mxu0 0.0
    %1038 = vmatpush2.xpose.msra.mxu0 0.0
    %1039 = vmatprep.subr.mxu0 0.0
    %1040 = vmatpush2.xpose.msra.mxu0 0.0
    %1041 = vmatprep.subr.mxu0 0.0
    %1042 = vmatpush2.xpose.msra.mxu0 0.0
    %1043 = vmatprep.subr.mxu0 0.0
    %1044 = vmatpush2.xpose.msra.mxu0 0.0
    %1045 = vmatprep.mubr.f32.mxu0 0.0
    %1046 = vmatmul.mubr.f32.gmra.mxu0 %v288
    %v1047 = vpop.f32.mrf.mxu0
    %v1048 = vadd.f32 0.0, %v1047
    %v1049 = vpop.f32.mrf.mxu0
    %1050 = vdwg.mxu0
    %v1051 = vsel %vm581, %v1048, -inf
    %1052 = vmax.xlane.f32.xlu0 %v1051
    %v1053 = vpop.xlane.xlu0 %1052
    %v1054 = vsub.f32 %v1048, %v1053
    %v1055 = vmul.f32 %v1054, 1.442695
    %v1056 = vpow.pop %v1055
    %v1057 = vsel %vm581, %v1056, 0.0
    %1058 = vadd.xlane.f32.xlu0 %v1057
    %v1059 = vpop.xlane.xlu0 %1058
    %v1060 = vrcp.pop %v1059
    %v1061 = vmul.f32 %v1056, %v1060
    %v1062 = vmul.f32 %v484, %v509
    %v1064 = vsel %vm581, %v1061, 0
    %1066 = vmatprep.subr.mxu0 0.0
    %1067 = vmatpush1.msra.mxu0 0.0
    %1068 = vmatprep.subr.mxu0 0.0
    %1069 = vmatpush1.msra.mxu0 0.0
    %1070 = vmatprep.subr.mxu0 0.0
    %1071 = vmatpush1.msra.mxu0 0.0
    %1072 = vmatprep.subr.mxu0 0.0
    %1073 = vmatpush1.msra.mxu0 0.0
    %1074 = vmatprep.subr.mxu0 0.0
    %1075 = vmatpush1.msra.mxu0 0.0
    %1076 = vmatprep.subr.mxu0 0.0
    %1077 = vmatpush1.msra.mxu0 0.0
    %1078 = vmatprep.subr.mxu0 0.0
    %1079 = vmatpush1.msra.mxu0 0.0
    %1080 = vmatprep.subr.mxu0 0.0
    %1081 = vmatpush1.msra.mxu0 0.0
    %1082 = vmatprep.subr.mxu0 0.0
    %1083 = vmatpush1.msra.mxu0 0.0
    %1084 = vmatprep.subr.mxu0 0.0
    %1085 = vmatpush1.msra.mxu0 0.0
    %1086 = vmatprep.subr.mxu0 0.0
    %1087 = vmatpush1.msra.mxu0 0.0
    %1088 = vmatprep.subr.mxu0 0.0
    %1089 = vmatpush1.msra.mxu0 0.0
    %1090 = vmatprep.subr.mxu0 0.0
    %1091 = vmatpush1.msra.mxu0 0.0
    %1092 = vmatprep.subr.mxu0 0.0
    %1093 = vmatpush1.msra.mxu0 0.0
    %1094 = vmatprep.subr.mxu0 0.0
    %1095 = vmatpush1.msra.mxu0 0.0
    %1096 = vmatprep.subr.mxu0 0.0
    %1097 = vmatpush1.msra.mxu0 %v1062
    %1098 = vmatprep.subr.mxu0 0.0
    %1099 = vmatpush2.msra.mxu0 0.0
    %1100 = vmatprep.subr.mxu0 0.0
    %1101 = vmatpush2.msra.mxu0 0.0
    %1102 = vmatprep.subr.mxu0 0.0
    %1103 = vmatpush2.msra.mxu0 0.0
    %1104 = vmatprep.subr.mxu0 0.0
    %1105 = vmatpush2.msra.mxu0 0.0
    %1106 = vmatprep.subr.mxu0 0.0
    %1107 = vmatpush2.msra.mxu0 0.0
    %1108 = vmatprep.subr.mxu0 0.0
    %1109 = vmatpush2.msra.mxu0 0.0
    %1110 = vmatprep.subr.mxu0 0.0
    %1111 = vmatpush2.msra.mxu0 0.0
    %1112 = vmatprep.subr.mxu0 0.0
    %1113 = vmatpush2.msra.mxu0 0.0
    %1114 = vmatprep.subr.mxu0 0.0
    %1115 = vmatpush2.msra.mxu0 0.0
    %1116 = vmatprep.subr.mxu0 0.0
    %1117 = vmatpush2.msra.mxu0 0.0
    %1118 = vmatprep.subr.mxu0 0.0
    %1119 = vmatpush2.msra.mxu0 0.0
    %1120 = vmatprep.subr.mxu0 0.0
    %1121 = vmatpush2.msra.mxu0 0.0
    %1122 = vmatprep.subr.mxu0 0.0
    %1123 = vmatpush2.msra.mxu0 0.0
    %1124 = vmatprep.subr.mxu0 0.0
    %1125 = vmatpush2.msra.mxu0 0.0
    %1126 = vmatprep.subr.mxu0 0.0
    %1127 = vmatpush2.msra.mxu0 0.0
    %1128 = vmatprep.subr.mxu0 0.0
    %1129 = vmatpush2.msra.mxu0 0.0
    %1130 = vmatprep.mubr.f32.mxu0 0.0
    %1131 = vmatmul.mubr.f32.gmra.mxu0 %v1064
    %v1132 = vpop.f32.mrf.mxu0
    %v1133 = vadd.f32 0.0, %v1132
    %v1134 = vpop.f32.mrf.mxu0
    %1135 = vdwg.mxu0
    %v1136 = vadd.f32 %v979, %v1133
    %v1137 = vmul.f32 %v391, %v497
    %1138 = vmatprep.subr.mxu0 0.0
    %1139 = vmatpush1.xpose.msra.mxu0 0.0
    %1140 = vmatprep.subr.mxu0 0.0
    %1141 = vmatpush1.xpose.msra.mxu0 0.0
    %1142 = vmatprep.subr.mxu0 0.0
    %1143 = vmatpush1.xpose.msra.mxu0 0.0
    %1144 = vmatprep.subr.mxu0 0.0
    %1145 = vmatpush1.xpose.msra.mxu0 0.0
    %1146 = vmatprep.subr.mxu0 0.0
    %1147 = vmatpush1.xpose.msra.mxu0 0.0
    %1148 = vmatprep.subr.mxu0 0.0
    %1149 = vmatpush1.xpose.msra.mxu0 0.0
    %1150 = vmatprep.subr.mxu0 0.0
    %1151 = vmatpush1.xpose.msra.mxu0 0.0
    %1152 = vmatprep.subr.mxu0 0.0
    %1153 = vmatpush1.xpose.msra.mxu0 0.0
    %1154 = vmatprep.subr.mxu0 0.0
    %1155 = vmatpush1.xpose.msra.mxu0 0.0
    %1156 = vmatprep.subr.mxu0 0.0
    %1157 = vmatpush1.xpose.msra.mxu0 0.0
    %1158 = vmatprep.subr.mxu0 0.0
    %1159 = vmatpush1.xpose.msra.mxu0 0.0
    %1160 = vmatprep.subr.mxu0 0.0
    %1161 = vmatpush1.xpose.msra.mxu0 0.0
    %1162 = vmatprep.subr.mxu0 0.0
    %1163 = vmatpush1.xpose.msra.mxu0 0.0
    %1164 = vmatprep.subr.mxu0 0.0
    %1165 = vmatpush1.xpose.msra.mxu0 0.0
    %1166 = vmatprep.subr.mxu0 0.0
    %1167 = vmatpush1.xpose.msra.mxu0 0.0
    %1168 = vmatprep.subr.mxu0 0.0
    %1169 = vmatpush1.xpose.msra.mxu0 %v1137
    %1170 = vmatprep.subr.mxu0 0.0
    %1171 = vmatpush2.xpose.msra.mxu0 0.0
    %1172 = vmatprep.subr.mxu0 0.0
    %1173 = vmatpush2.xpose.msra.mxu0 0.0
    %1174 = vmatprep.subr.mxu0 0.0
    %1175 = vmatpush2.xpose.msra.mxu0 0.0
    %1176 = vmatprep.subr.mxu0 0.0
    %1177 = vmatpush2.xpose.msra.mxu0 0.0
    %1178 = vmatprep.subr.mxu0 0.0
    %1179 = vmatpush2.xpose.msra.mxu0 0.0
    %1180 = vmatprep.subr.mxu0 0.0
    %1181 = vmatpush2.xpose.msra.mxu0 0.0
    %1182 = vmatprep.subr.mxu0 0.0
    %1183 = vmatpush2.xpose.msra.mxu0 0.0
    %1184 = vmatprep.subr.mxu0 0.0
    %1185 = vmatpush2.xpose.msra.mxu0 0.0
    %1186 = vmatprep.subr.mxu0 0.0
    %1187 = vmatpush2.xpose.msra.mxu0 0.0
    %1188 = vmatprep.subr.mxu0 0.0
    %1189 = vmatpush2.xpose.msra.mxu0 0.0
    %1190 = vmatprep.subr.mxu0 0.0
    %1191 = vmatpush2.xpose.msra.mxu0 0.0
    %1192 = vmatprep.subr.mxu0 0.0
    %1193 = vmatpush2.xpose.msra.mxu0 0.0
    %1194 = vmatprep.subr.mxu0 0.0
    %1195 = vmatpush2.xpose.msra.mxu0 0.0
    %1196 = vmatprep.subr.mxu0 0.0
    %1197 = vmatpush2.xpose.msra.mxu0 0.0
    %1198 = vmatprep.subr.mxu0 0.0
    %1199 = vmatpush2.xpose.msra.mxu0 0.0
    %1200 = vmatprep.subr.mxu0 0.0
    %1201 = vmatpush2.xpose.msra.mxu0 0.0
    %1202 = vmatprep.mubr.f32.mxu0 0.0
    %1203 = vmatmul.mubr.f32.gmra.mxu0 %v293
    %v1204 = vpop.f32.mrf.mxu0
    %v1205 = vadd.f32 0.0, %v1204
    %v1206 = vpop.f32.mrf.mxu0
    %1207 = vdwg.mxu0
    %v1208 = vsel %vm581, %v1205, -inf
    %1209 = vmax.xlane.f32.xlu0 %v1208
    %v1210 = vpop.xlane.xlu0 %1209
    %v1211 = vsub.f32 %v1205, %v1210
    %v1212 = vmul.f32 %v1211, 1.442695
    %v1213 = vpow.pop %v1212
    %v1214 = vsel %vm581, %v1213, 0.0
    %1215 = vadd.xlane.f32.xlu0 %v1214
    %v1216 = vpop.xlane.xlu0 %1215
    %v1217 = vrcp.pop %v1216
    %v1218 = vmul.f32 %v1213, %v1217
    %v1219 = vmul.f32 %v489, %v497
    %v1220 = vmul.f32 %v391, %v501
    %1221 = vmatprep.subr.mxu0 0.0
    %1222 = vmatpush1.xpose.msra.mxu0 0.0
    %1223 = vmatprep.subr.mxu0 0.0
    %1224 = vmatpush1.xpose.msra.mxu0 0.0
    %1225 = vmatprep.subr.mxu0 0.0
    %1226 = vmatpush1.xpose.msra.mxu0 0.0
    %1227 = vmatprep.subr.mxu0 0.0
    %1228 = vmatpush1.xpose.msra.mxu0 0.0
    %1229 = vmatprep.subr.mxu0 0.0
    %1230 = vmatpush1.xpose.msra.mxu0 0.0
    %1231 = vmatprep.subr.mxu0 0.0
    %1232 = vmatpush1.xpose.msra.mxu0 0.0
    %1233 = vmatprep.subr.mxu0 0.0
    %1234 = vmatpush1.xpose.msra.mxu0 0.0
    %1235 = vmatprep.subr.mxu0 0.0
    %1236 = vmatpush1.xpose.msra.mxu0 0.0
    %1237 = vmatprep.subr.mxu0 0.0
    %1238 = vmatpush1.xpose.msra.mxu0 0.0
    %1239 = vmatprep.subr.mxu0 0.0
    %1240 = vmatpush1.xpose.msra.mxu0 0.0
    %1241 = vmatprep.subr.mxu0 0.0
    %1242 = vmatpush1.xpose.msra.mxu0 0.0
    %1243 = vmatprep.subr.mxu0 0.0
    %1244 = vmatpush1.xpose.msra.mxu0 0.0
    %1245 = vmatprep.subr.mxu0 0.0
    %1246 = vmatpush1.xpose.msra.mxu0 0.0
    %1247 = vmatprep.subr.mxu0 0.0
    %1248 = vmatpush1.xpose.msra.mxu0 0.0
    %1249 = vmatprep.subr.mxu0 0.0
    %1250 = vmatpush1.xpose.msra.mxu0 0.0
    %1251 = vmatprep.subr.mxu0 0.0
    %1252 = vmatpush1.xpose.msra.mxu0 %v1220
    %1253 = vmatprep.subr.mxu0 0.0
    %1254 = vmatpush2.xpose.msra.mxu0 0.0
    %1255 = vmatprep.subr.mxu0 0.0
    %1256 = vmatpush2.xpose.msra.mxu0 0.0
    %1257 = vmatprep.subr.mxu0 0.0
    %1258 = vmatpush2.xpose.msra.mxu0 0.0
    %1259 = vmatprep.subr.mxu0 0.0
    %1260 = vmatpush2.xpose.msra.mxu0 0.0
    %1261 = vmatprep.subr.mxu0 0.0
    %1262 = vmatpush2.xpose.msra.mxu0 0.0
    %1263 = vmatprep.subr.mxu0 0.0
    %1264 = vmatpush2.xpose.msra.mxu0 0.0
    %1265 = vmatprep.subr.mxu0 0.0
    %1266 = vmatpush2.xpose.msra.mxu0 0.0
    %1267 = vmatprep.subr.mxu0 0.0
    %1268 = vmatpush2.xpose.msra.mxu0 0.0
    %1269 = vmatprep.subr.mxu0 0.0
    %1270 = vmatpush2.xpose.msra.mxu0 0.0
    %1271 = vmatprep.subr.mxu0 0.0
    %1272 = vmatpush2.xpose.msra.mxu0 0.0
    %1273 = vmatprep.subr.mxu0 0.0
    %1274 = vmatpush2.xpose.msra.mxu0 0.0
    %1275 = vmatprep.subr.mxu0 0.0
    %1276 = vmatpush2.xpose.msra.mxu0 0.0
    %1277 = vmatprep.subr.mxu0 0.0
    %1278 = vmatpush2.xpose.msra.mxu0 0.0
    %1279 = vmatprep.subr.mxu0 0.0
    %1280 = vmatpush2.xpose.msra.mxu0 0.0
    %1281 = vmatprep.subr.mxu0 0.0
    %1282 = vmatpush2.xpose.msra.mxu0 0.0
    %1283 = vmatprep.subr.mxu0 0.0
    %1284 = vmatpush2.xpose.msra.mxu0 0.0
    %1285 = vmatprep.mubr.f32.mxu0 0.0
    %1286 = vmatmul.mubr.f32.gmra.mxu0 %v293
    %v1287 = vpop.f32.mrf.mxu0
    %v1288 = vadd.f32 0.0, %v1287
    %v1289 = vpop.f32.mrf.mxu0
    %1290 = vdwg.mxu0
    %v1291 = vsel %vm581, %v1288, -inf
    %1292 = vmax.xlane.f32.xlu0 %v1291
    %v1293 = vpop.xlane.xlu0 %1292
    %v1294 = vsub.f32 %v1288, %v1293
    %v1295 = vmul.f32 %v1294, 1.442695
    %v1296 = vpow.pop %v1295
    %v1297 = vsel %vm581, %v1296, 0.0
    %1298 = vadd.xlane.f32.xlu0 %v1297
    %v1299 = vpop.xlane.xlu0 %1298
    %v1300 = vrcp.pop %v1299
    %v1301 = vmul.f32 %v1296, %v1300
    %v1302 = vmul.f32 %v489, %v501
    %v1304 = vsel %vm581, %v1301, 0
    %1306 = vmatprep.subr.mxu0 0.0
    %1307 = vmatpush1.msra.mxu0 0.0
    %1308 = vmatprep.subr.mxu0 0.0
    %1309 = vmatpush1.msra.mxu0 0.0
    %1310 = vmatprep.subr.mxu0 0.0
    %1311 = vmatpush1.msra.mxu0 0.0
    %1312 = vmatprep.subr.mxu0 0.0
    %1313 = vmatpush1.msra.mxu0 0.0
    %1314 = vmatprep.subr.mxu0 0.0
    %1315 = vmatpush1.msra.mxu0 0.0
    %1316 = vmatprep.subr.mxu0 0.0
    %1317 = vmatpush1.msra.mxu0 0.0
    %1318 = vmatprep.subr.mxu0 0.0
    %1319 = vmatpush1.msra.mxu0 0.0
    %1320 = vmatprep.subr.mxu0 0.0
    %1321 = vmatpush1.msra.mxu0 0.0
    %1322 = vmatprep.subr.mxu0 0.0
    %1323 = vmatpush1.msra.mxu0 0.0
    %1324 = vmatprep.subr.mxu0 0.0
    %1325 = vmatpush1.msra.mxu0 0.0
    %1326 = vmatprep.subr.mxu0 0.0
    %1327 = vmatpush1.msra.mxu0 0.0
    %1328 = vmatprep.subr.mxu0 0.0
    %1329 = vmatpush1.msra.mxu0 0.0
    %1330 = vmatprep.subr.mxu0 0.0
    %1331 = vmatpush1.msra.mxu0 0.0
    %1332 = vmatprep.subr.mxu0 0.0
    %1333 = vmatpush1.msra.mxu0 0.0
    %1334 = vmatprep.subr.mxu0 0.0
    %1335 = vmatpush1.msra.mxu0 0.0
    %1336 = vmatprep.subr.mxu0 0.0
    %1337 = vmatpush1.msra.mxu0 %v1302
    %1338 = vmatprep.subr.mxu0 0.0
    %1339 = vmatpush2.msra.mxu0 0.0
    %1340 = vmatprep.subr.mxu0 0.0
    %1341 = vmatpush2.msra.mxu0 0.0
    %1342 = vmatprep.subr.mxu0 0.0
    %1343 = vmatpush2.msra.mxu0 0.0
    %1344 = vmatprep.subr.mxu0 0.0
    %1345 = vmatpush2.msra.mxu0 0.0
    %1346 = vmatprep.subr.mxu0 0.0
    %1347 = vmatpush2.msra.mxu0 0.0
    %1348 = vmatprep.subr.mxu0 0.0
    %1349 = vmatpush2.msra.mxu0 0.0
    %1350 = vmatprep.subr.mxu0 0.0
    %1351 = vmatpush2.msra.mxu0 0.0
    %1352 = vmatprep.subr.mxu0 0.0
    %1353 = vmatpush2.msra.mxu0 0.0
    %1354 = vmatprep.subr.mxu0 0.0
    %1355 = vmatpush2.msra.mxu0 0.0
    %1356 = vmatprep.subr.mxu0 0.0
    %1357 = vmatpush2.msra.mxu0 0.0
    %1358 = vmatprep.subr.mxu0 0.0
    %1359 = vmatpush2.msra.mxu0 0.0
    %1360 = vmatprep.subr.mxu0 0.0
    %1361 = vmatpush2.msra.mxu0 0.0
    %1362 = vmatprep.subr.mxu0 0.0
    %1363 = vmatpush2.msra.mxu0 0.0
    %1364 = vmatprep.subr.mxu0 0.0
    %1365 = vmatpush2.msra.mxu0 0.0
    %1366 = vmatprep.subr.mxu0 0.0
    %1367 = vmatpush2.msra.mxu0 0.0
    %1368 = vmatprep.subr.mxu0 0.0
    %1369 = vmatpush2.msra.mxu0 0.0
    %1370 = vmatprep.mubr.f32.mxu0 0.0
    %1371 = vmatmul.mubr.f32.gmra.mxu0 %v1304
    %v1372 = vpop.f32.mrf.mxu0
    %v1373 = vadd.f32 0.0, %v1372
    %v1374 = vpop.f32.mrf.mxu0
    %1375 = vdwg.mxu0
    %v1377 = vsel %vm581, %v1218, 0
    %1379 = vmatprep.subr.mxu0 0.0
    %1380 = vmatpush1.msra.mxu0 0.0
    %1381 = vmatprep.subr.mxu0 0.0
    %1382 = vmatpush1.msra.mxu0 0.0
    %1383 = vmatprep.subr.mxu0 0.0
    %1384 = vmatpush1.msra.mxu0 0.0
    %1385 = vmatprep.subr.mxu0 0.0
    %1386 = vmatpush1.msra.mxu0 0.0
    %1387 = vmatprep.subr.mxu0 0.0
    %1388 = vmatpush1.msra.mxu0 0.0
    %1389 = vmatprep.subr.mxu0 0.0
    %1390 = vmatpush1.msra.mxu0 0.0
    %1391 = vmatprep.subr.mxu0 0.0
    %1392 = vmatpush1.msra.mxu0 0.0
    %1393 = vmatprep.subr.mxu0 0.0
    %1394 = vmatpush1.msra.mxu0 0.0
    %1395 = vmatprep.subr.mxu0 0.0
    %1396 = vmatpush1.msra.mxu0 0.0
    %1397 = vmatprep.subr.mxu0 0.0
    %1398 = vmatpush1.msra.mxu0 0.0
    %1399 = vmatprep.subr.mxu0 0.0
    %1400 = vmatpush1.msra.mxu0 0.0
    %1401 = vmatprep.subr.mxu0 0.0
    %1402 = vmatpush1.msra.mxu0 0.0
    %1403 = vmatprep.subr.mxu0 0.0
    %1404 = vmatpush1.msra.mxu0 0.0
    %1405 = vmatprep.subr.mxu0 0.0
    %1406 = vmatpush1.msra.mxu0 0.0
    %1407 = vmatprep.subr.mxu0 0.0
    %1408 = vmatpush1.msra.mxu0 0.0
    %1409 = vmatprep.subr.mxu0 0.0
    %1410 = vmatpush1.msra.mxu0 %v1219
    %1411 = vmatprep.subr.mxu0 0.0
    %1412 = vmatpush2.msra.mxu0 0.0
    %1413 = vmatprep.subr.mxu0 0.0
    %1414 = vmatpush2.msra.mxu0 0.0
    %1415 = vmatprep.subr.mxu0 0.0
    %1416 = vmatpush2.msra.mxu0 0.0
    %1417 = vmatprep.subr.mxu0 0.0
    %1418 = vmatpush2.msra.mxu0 0.0
    %1419 = vmatprep.subr.mxu0 0.0
    %1420 = vmatpush2.msra.mxu0 0.0
    %1421 = vmatprep.subr.mxu0 0.0
    %1422 = vmatpush2.msra.mxu0 0.0
    %1423 = vmatprep.subr.mxu0 0.0
    %1424 = vmatpush2.msra.mxu0 0.0
    %1425 = vmatprep.subr.mxu0 0.0
    %1426 = vmatpush2.msra.mxu0 0.0
    %1427 = vmatprep.subr.mxu0 0.0
    %1428 = vmatpush2.msra.mxu0 0.0
    %1429 = vmatprep.subr.mxu0 0.0
    %1430 = vmatpush2.msra.mxu0 0.0
    %1431 = vmatprep.subr.mxu0 0.0
    %1432 = vmatpush2.msra.mxu0 0.0
    %1433 = vmatprep.subr.mxu0 0.0
    %1434 = vmatpush2.msra.mxu0 0.0
    %1435 = vmatprep.subr.mxu0 0.0
    %1436 = vmatpush2.msra.mxu0 0.0
    %1437 = vmatprep.subr.mxu0 0.0
    %1438 = vmatpush2.msra.mxu0 0.0
    %1439 = vmatprep.subr.mxu0 0.0
    %1440 = vmatpush2.msra.mxu0 0.0
    %1441 = vmatprep.subr.mxu0 0.0
    %1442 = vmatpush2.msra.mxu0 0.0
    %1443 = vmatprep.mubr.f32.mxu0 0.0
    %1444 = vmatmul.mubr.f32.gmra.mxu0 %v1377
    %v1445 = vpop.f32.mrf.mxu0
    %v1446 = vadd.f32 %v1373, %v1445
    %v1447 = vpop.f32.mrf.mxu0
    %1448 = vdwg.mxu0
    %v1449 = vmul.f32 %v391, %v505
    %1450 = vmatprep.subr.mxu0 0.0
    %1451 = vmatpush1.xpose.msra.mxu0 0.0
    %1452 = vmatprep.subr.mxu0 0.0
    %1453 = vmatpush1.xpose.msra.mxu0 0.0
    %1454 = vmatprep.subr.mxu0 0.0
    %1455 = vmatpush1.xpose.msra.mxu0 0.0
    %1456 = vmatprep.subr.mxu0 0.0
    %1457 = vmatpush1.xpose.msra.mxu0 0.0
    %1458 = vmatprep.subr.mxu0 0.0
    %1459 = vmatpush1.xpose.msra.mxu0 0.0
    %1460 = vmatprep.subr.mxu0 0.0
    %1461 = vmatpush1.xpose.msra.mxu0 0.0
    %1462 = vmatprep.subr.mxu0 0.0
    %1463 = vmatpush1.xpose.msra.mxu0 0.0
    %1464 = vmatprep.subr.mxu0 0.0
    %1465 = vmatpush1.xpose.msra.mxu0 0.0
    %1466 = vmatprep.subr.mxu0 0.0
    %1467 = vmatpush1.xpose.msra.mxu0 0.0
    %1468 = vmatprep.subr.mxu0 0.0
    %1469 = vmatpush1.xpose.msra.mxu0 0.0
    %1470 = vmatprep.subr.mxu0 0.0
    %1471 = vmatpush1.xpose.msra.mxu0 0.0
    %1472 = vmatprep.subr.mxu0 0.0
    %1473 = vmatpush1.xpose.msra.mxu0 0.0
    %1474 = vmatprep.subr.mxu0 0.0
    %1475 = vmatpush1.xpose.msra.mxu0 0.0
    %1476 = vmatprep.subr.mxu0 0.0
    %1477 = vmatpush1.xpose.msra.mxu0 0.0
    %1478 = vmatprep.subr.mxu0 0.0
    %1479 = vmatpush1.xpose.msra.mxu0 0.0
    %1480 = vmatprep.subr.mxu0 0.0
    %1481 = vmatpush1.xpose.msra.mxu0 %v1449
    %1482 = vmatprep.subr.mxu0 0.0
    %1483 = vmatpush2.xpose.msra.mxu0 0.0
    %1484 = vmatprep.subr.mxu0 0.0
    %1485 = vmatpush2.xpose.msra.mxu0 0.0
    %1486 = vmatprep.subr.mxu0 0.0
    %1487 = vmatpush2.xpose.msra.mxu0 0.0
    %1488 = vmatprep.subr.mxu0 0.0
    %1489 = vmatpush2.xpose.msra.mxu0 0.0
    %1490 = vmatprep.subr.mxu0 0.0
    %1491 = vmatpush2.xpose.msra.mxu0 0.0
    %1492 = vmatprep.subr.mxu0 0.0
    %1493 = vmatpush2.xpose.msra.mxu0 0.0
    %1494 = vmatprep.subr.mxu0 0.0
    %1495 = vmatpush2.xpose.msra.mxu0 0.0
    %1496 = vmatprep.subr.mxu0 0.0
    %1497 = vmatpush2.xpose.msra.mxu0 0.0
    %1498 = vmatprep.subr.mxu0 0.0
    %1499 = vmatpush2.xpose.msra.mxu0 0.0
    %1500 = vmatprep.subr.mxu0 0.0
    %1501 = vmatpush2.xpose.msra.mxu0 0.0
    %1502 = vmatprep.subr.mxu0 0.0
    %1503 = vmatpush2.xpose.msra.mxu0 0.0
    %1504 = vmatprep.subr.mxu0 0.0
    %1505 = vmatpush2.xpose.msra.mxu0 0.0
    %1506 = vmatprep.subr.mxu0 0.0
    %1507 = vmatpush2.xpose.msra.mxu0 0.0
    %1508 = vmatprep.subr.mxu0 0.0
    %1509 = vmatpush2.xpose.msra.mxu0 0.0
    %1510 = vmatprep.subr.mxu0 0.0
    %1511 = vmatpush2.xpose.msra.mxu0 0.0
    %1512 = vmatprep.subr.mxu0 0.0
    %1513 = vmatpush2.xpose.msra.mxu0 0.0
    %1514 = vmatprep.mubr.f32.mxu0 0.0
    %1515 = vmatmul.mubr.f32.gmra.mxu0 %v293
    %v1516 = vpop.f32.mrf.mxu0
    %v1517 = vadd.f32 0.0, %v1516
    %v1518 = vpop.f32.mrf.mxu0
    %1519 = vdwg.mxu0
    %v1520 = vsel %vm581, %v1517, -inf
    %1521 = vmax.xlane.f32.xlu0 %v1520
    %v1522 = vpop.xlane.xlu0 %1521
    %v1523 = vsub.f32 %v1517, %v1522
    %v1524 = vmul.f32 %v1523, 1.442695
    %v1525 = vpow.pop %v1524
    %v1526 = vsel %vm581, %v1525, 0.0
    %1527 = vadd.xlane.f32.xlu0 %v1526
    %v1528 = vpop.xlane.xlu0 %1527
    %v1529 = vrcp.pop %v1528
    %v1530 = vmul.f32 %v1525, %v1529
    %v1531 = vmul.f32 %v489, %v505
    %v1533 = vsel %vm581, %v1530, 0
    %1535 = vmatprep.subr.mxu0 0.0
    %1536 = vmatpush1.msra.mxu0 0.0
    %1537 = vmatprep.subr.mxu0 0.0
    %1538 = vmatpush1.msra.mxu0 0.0
    %1539 = vmatprep.subr.mxu0 0.0
    %1540 = vmatpush1.msra.mxu0 0.0
    %1541 = vmatprep.subr.mxu0 0.0
    %1542 = vmatpush1.msra.mxu0 0.0
    %1543 = vmatprep.subr.mxu0 0.0
    %1544 = vmatpush1.msra.mxu0 0.0
    %1545 = vmatprep.subr.mxu0 0.0
    %1546 = vmatpush1.msra.mxu0 0.0
    %1547 = vmatprep.subr.mxu0 0.0
    %1548 = vmatpush1.msra.mxu0 0.0
    %1549 = vmatprep.subr.mxu0 0.0
    %1550 = vmatpush1.msra.mxu0 0.0
    %1551 = vmatprep.subr.mxu0 0.0
    %1552 = vmatpush1.msra.mxu0 0.0
    %1553 = vmatprep.subr.mxu0 0.0
    %1554 = vmatpush1.msra.mxu0 0.0
    %1555 = vmatprep.subr.mxu0 0.0
    %1556 = vmatpush1.msra.mxu0 0.0
    %1557 = vmatprep.subr.mxu0 0.0
    %1558 = vmatpush1.msra.mxu0 0.0
    %1559 = vmatprep.subr.mxu0 0.0
    %1560 = vmatpush1.msra.mxu0 0.0
    %1561 = vmatprep.subr.mxu0 0.0
    %1562 = vmatpush1.msra.mxu0 0.0
    %1563 = vmatprep.subr.mxu0 0.0
    %1564 = vmatpush1.msra.mxu0 0.0
    %1565 = vmatprep.subr.mxu0 0.0
    %1566 = vmatpush1.msra.mxu0 %v1531
    %1567 = vmatprep.subr.mxu0 0.0
    %1568 = vmatpush2.msra.mxu0 0.0
    %1569 = vmatprep.subr.mxu0 0.0
    %1570 = vmatpush2.msra.mxu0 0.0
    %1571 = vmatprep.subr.mxu0 0.0
    %1572 = vmatpush2.msra.mxu0 0.0
    %1573 = vmatprep.subr.mxu0 0.0
    %1574 = vmatpush2.msra.mxu0 0.0
    %1575 = vmatprep.subr.mxu0 0.0
    %1576 = vmatpush2.msra.mxu0 0.0
    %1577 = vmatprep.subr.mxu0 0.0
    %1578 = vmatpush2.msra.mxu0 0.0
    %1579 = vmatprep.subr.mxu0 0.0
    %1580 = vmatpush2.msra.mxu0 0.0
    %1581 = vmatprep.subr.mxu0 0.0
    %1582 = vmatpush2.msra.mxu0 0.0
    %1583 = vmatprep.subr.mxu0 0.0
    %1584 = vmatpush2.msra.mxu0 0.0
    %1585 = vmatprep.subr.mxu0 0.0
    %1586 = vmatpush2.msra.mxu0 0.0
    %1587 = vmatprep.subr.mxu0 0.0
    %1588 = vmatpush2.msra.mxu0 0.0
    %1589 = vmatprep.subr.mxu0 0.0
    %1590 = vmatpush2.msra.mxu0 0.0
    %1591 = vmatprep.subr.mxu0 0.0
    %1592 = vmatpush2.msra.mxu0 0.0
    %1593 = vmatprep.subr.mxu0 0.0
    %1594 = vmatpush2.msra.mxu0 0.0
    %1595 = vmatprep.subr.mxu0 0.0
    %1596 = vmatpush2.msra.mxu0 0.0
    %1597 = vmatprep.subr.mxu0 0.0
    %1598 = vmatpush2.msra.mxu0 0.0
    %1599 = vmatprep.mubr.f32.mxu0 0.0
    %1600 = vmatmul.mubr.f32.gmra.mxu0 %v1533
    %v1601 = vpop.f32.mrf.mxu0
    %v1602 = vadd.f32 0.0, %v1601
    %v1603 = vpop.f32.mrf.mxu0
    %1604 = vdwg.mxu0
    %v1605 = vadd.f32 %v1446, %v1602
    %v1606 = vmul.f32 %v391, %v509
    %1607 = vmatprep.subr.mxu0 0.0
    %1608 = vmatpush1.xpose.msra.mxu0 0.0
    %1609 = vmatprep.subr.mxu0 0.0
    %1610 = vmatpush1.xpose.msra.mxu0 0.0
    %1611 = vmatprep.subr.mxu0 0.0
    %1612 = vmatpush1.xpose.msra.mxu0 0.0
    %1613 = vmatprep.subr.mxu0 0.0
    %1614 = vmatpush1.xpose.msra.mxu0 0.0
    %1615 = vmatprep.subr.mxu0 0.0
    %1616 = vmatpush1.xpose.msra.mxu0 0.0
    %1617 = vmatprep.subr.mxu0 0.0
    %1618 = vmatpush1.xpose.msra.mxu0 0.0
    %1619 = vmatprep.subr.mxu0 0.0
    %1620 = vmatpush1.xpose.msra.mxu0 0.0
    %1621 = vmatprep.subr.mxu0 0.0
    %1622 = vmatpush1.xpose.msra.mxu0 0.0
    %1623 = vmatprep.subr.mxu0 0.0
    %1624 = vmatpush1.xpose.msra.mxu0 0.0
    %1625 = vmatprep.subr.mxu0 0.0
    %1626 = vmatpush1.xpose.msra.mxu0 0.0
    %1627 = vmatprep.subr.mxu0 0.0
    %1628 = vmatpush1.xpose.msra.mxu0 0.0
    %1629 = vmatprep.subr.mxu0 0.0
    %1630 = vmatpush1.xpose.msra.mxu0 0.0
    %1631 = vmatprep.subr.mxu0 0.0
    %1632 = vmatpush1.xpose.msra.mxu0 0.0
    %1633 = vmatprep.subr.mxu0 0.0
    %1634 = vmatpush1.xpose.msra.mxu0 0.0
    %1635 = vmatprep.subr.mxu0 0.0
    %1636 = vmatpush1.xpose.msra.mxu0 0.0
    %1637 = vmatprep.subr.mxu0 0.0
    %1638 = vmatpush1.xpose.msra.mxu0 %v1606
    %1639 = vmatprep.subr.mxu0 0.0
    %1640 = vmatpush2.xpose.msra.mxu0 0.0
    %1641 = vmatprep.subr.mxu0 0.0
    %1642 = vmatpush2.xpose.msra.mxu0 0.0
    %1643 = vmatprep.subr.mxu0 0.0
    %1644 = vmatpush2.xpose.msra.mxu0 0.0
    %1645 = vmatprep.subr.mxu0 0.0
    %1646 = vmatpush2.xpose.msra.mxu0 0.0
    %1647 = vmatprep.subr.mxu0 0.0
    %1648 = vmatpush2.xpose.msra.mxu0 0.0
    %1649 = vmatprep.subr.mxu0 0.0
    %1650 = vmatpush2.xpose.msra.mxu0 0.0
    %1651 = vmatprep.subr.mxu0 0.0
    %1652 = vmatpush2.xpose.msra.mxu0 0.0
    %1653 = vmatprep.subr.mxu0 0.0
    %1654 = vmatpush2.xpose.msra.mxu0 0.0
    %1655 = vmatprep.subr.mxu0 0.0
    %1656 = vmatpush2.xpose.msra.mxu0 0.0
    %1657 = vmatprep.subr.mxu0 0.0
    %1658 = vmatpush2.xpose.msra.mxu0 0.0
    %1659 = vmatprep.subr.mxu0 0.0
    %1660 = vmatpush2.xpose.msra.mxu0 0.0
    %1661 = vmatprep.subr.mxu0 0.0
    %1662 = vmatpush2.xpose.msra.mxu0 0.0
    %1663 = vmatprep.subr.mxu0 0.0
    %1664 = vmatpush2.xpose.msra.mxu0 0.0
    %1665 = vmatprep.subr.mxu0 0.0
    %1666 = vmatpush2.xpose.msra.mxu0 0.0
    %1667 = vmatprep.subr.mxu0 0.0
    %1668 = vmatpush2.xpose.msra.mxu0 0.0
    %1669 = vmatprep.subr.mxu0 0.0
    %1670 = vmatpush2.xpose.msra.mxu0 0.0
    %1671 = vmatprep.mubr.f32.mxu0 0.0
    %1672 = vmatmul.mubr.f32.gmra.mxu0 %v293
    %v1673 = vpop.f32.mrf.mxu0
    %v1674 = vadd.f32 0.0, %v1673
    %v1675 = vpop.f32.mrf.mxu0
    %1676 = vdwg.mxu0
    %v1677 = vsel %vm581, %v1674, -inf
    %1678 = vmax.xlane.f32.xlu0 %v1677
    %v1679 = vpop.xlane.xlu0 %1678
    %v1680 = vsub.f32 %v1674, %v1679
    %v1681 = vmul.f32 %v1680, 1.442695
    %v1682 = vpow.pop %v1681
    %v1683 = vsel %vm581, %v1682, 0.0
    %1684 = vadd.xlane.f32.xlu0 %v1683
    %v1685 = vpop.xlane.xlu0 %1684
    %v1686 = vrcp.pop %v1685
    %v1687 = vmul.f32 %v1682, %v1686
    %v1688 = vmul.f32 %v489, %v509
    %v1690 = vsel %vm581, %v1687, 0
    %1692 = vmatprep.subr.mxu0 0.0
    %1693 = vmatpush1.msra.mxu0 0.0
    %1694 = vmatprep.subr.mxu0 0.0
    %1695 = vmatpush1.msra.mxu0 0.0
    %1696 = vmatprep.subr.mxu0 0.0
    %1697 = vmatpush1.msra.mxu0 0.0
    %1698 = vmatprep.subr.mxu0 0.0
    %1699 = vmatpush1.msra.mxu0 0.0
    %1700 = vmatprep.subr.mxu0 0.0
    %1701 = vmatpush1.msra.mxu0 0.0
    %1702 = vmatprep.subr.mxu0 0.0
    %1703 = vmatpush1.msra.mxu0 0.0
    %1704 = vmatprep.subr.mxu0 0.0
    %1705 = vmatpush1.msra.mxu0 0.0
    %1706 = vmatprep.subr.mxu0 0.0
    %1707 = vmatpush1.msra.mxu0 0.0
    %1708 = vmatprep.subr.mxu0 0.0
    %1709 = vmatpush1.msra.mxu0 0.0
    %1710 = vmatprep.subr.mxu0 0.0
    %1711 = vmatpush1.msra.mxu0 0.0
    %1712 = vmatprep.subr.mxu0 0.0
    %1713 = vmatpush1.msra.mxu0 0.0
    %1714 = vmatprep.subr.mxu0 0.0
    %1715 = vmatpush1.msra.mxu0 0.0
    %1716 = vmatprep.subr.mxu0 0.0
    %1717 = vmatpush1.msra.mxu0 0.0
    %1718 = vmatprep.subr.mxu0 0.0
    %1719 = vmatpush1.msra.mxu0 0.0
    %1720 = vmatprep.subr.mxu0 0.0
    %1721 = vmatpush1.msra.mxu0 0.0
    %1722 = vmatprep.subr.mxu0 0.0
    %1723 = vmatpush1.msra.mxu0 %v1688
    %1724 = vmatprep.subr.mxu0 0.0
    %1725 = vmatpush2.msra.mxu0 0.0
    %1726 = vmatprep.subr.mxu0 0.0
    %1727 = vmatpush2.msra.mxu0 0.0
    %1728 = vmatprep.subr.mxu0 0.0
    %1729 = vmatpush2.msra.mxu0 0.0
    %1730 = vmatprep.subr.mxu0 0.0
    %1731 = vmatpush2.msra.mxu0 0.0
    %1732 = vmatprep.subr.mxu0 0.0
    %1733 = vmatpush2.msra.mxu0 0.0
    %1734 = vmatprep.subr.mxu0 0.0
    %1735 = vmatpush2.msra.mxu0 0.0
    %1736 = vmatprep.subr.mxu0 0.0
    %1737 = vmatpush2.msra.mxu0 0.0
    %1738 = vmatprep.subr.mxu0 0.0
    %1739 = vmatpush2.msra.mxu0 0.0
    %1740 = vmatprep.subr.mxu0 0.0
    %1741 = vmatpush2.msra.mxu0 0.0
    %1742 = vmatprep.subr.mxu0 0.0
    %1743 = vmatpush2.msra.mxu0 0.0
    %1744 = vmatprep.subr.mxu0 0.0
    %1745 = vmatpush2.msra.mxu0 0.0
    %1746 = vmatprep.subr.mxu0 0.0
    %1747 = vmatpush2.msra.mxu0 0.0
    %1748 = vmatprep.subr.mxu0 0.0
    %1749 = vmatpush2.msra.mxu0 0.0
    %1750 = vmatprep.subr.mxu0 0.0
    %1751 = vmatpush2.msra.mxu0 0.0
    %1752 = vmatprep.subr.mxu0 0.0
    %1753 = vmatpush2.msra.mxu0 0.0
    %1754 = vmatprep.subr.mxu0 0.0
    %1755 = vmatpush2.msra.mxu0 0.0
    %1756 = vmatprep.mubr.f32.mxu0 0.0
    %1757 = vmatmul.mubr.f32.gmra.mxu0 %v1690
    %v1758 = vpop.f32.mrf.mxu0
    %v1759 = vadd.f32 0.0, %v1758
    %v1760 = vpop.f32.mrf.mxu0
    %1761 = vdwg.mxu0
    %v1762 = vadd.f32 %v1605, %v1759
    %v1763 = vld [vmem:[#allocation10] sm:$0xff]
    %v1764 = vld [vmem:[#allocation10 + $0x8] sm:$0xff]
    %v1765 = vld [vmem:[#allocation10 + $0x10] sm:$0xff]
    %v1766 = vld [vmem:[#allocation10 + $0x18] sm:$0xff]
    %v1767 = vld [vmem:[#allocation10 + $0x20] sm:$0xff]
    %v1768 = vld [vmem:[#allocation10 + $0x28] sm:$0xff]
    %v1769 = vld [vmem:[#allocation10 + $0x30] sm:$0xff]
    %v1770 = vld [vmem:[#allocation10 + $0x38] sm:$0xff]
    %v1771 = vld [vmem:[#allocation10 + $0x40] sm:$0xff]
    %v1772 = vld [vmem:[#allocation10 + $0x48] sm:$0xff]
    %v1773 = vld [vmem:[#allocation10 + $0x50] sm:$0xff]
    %v1774 = vld [vmem:[#allocation10 + $0x58] sm:$0xff]
    %v1775 = vld [vmem:[#allocation10 + $0x60] sm:$0xff]
    %v1776 = vld [vmem:[#allocation10 + $0x68] sm:$0xff]
    %v1777 = vld [vmem:[#allocation10 + $0x70] sm:$0xff]
    %v1778 = vld [vmem:[#allocation10 + $0x78] sm:$0xff]
    %v1779 = vld [vmem:[%s10] sm:$0x1]
    %v1781 = vlaneseq
    %v1782 = vshrl.u32 %v1781, 7
    %v1783 = vsub.s32 0, %v1782
    %v1784 = vrot.slane %v1779, %v1783
    %1786 = vmatprep.subr.mxu0 0.0
    %1787 = vmatpush1.msra.mxu0 %v1778
    %1788 = vmatprep.subr.mxu0 0.0
    %1789 = vmatpush1.msra.mxu0 %v1777
    %1790 = vmatprep.subr.mxu0 0.0
    %1791 = vmatpush1.msra.mxu0 %v1776
    %1792 = vmatprep.subr.mxu0 0.0
    %1793 = vmatpush1.msra.mxu0 %v1775
    %1794 = vmatprep.subr.mxu0 0.0
    %1795 = vmatpush1.msra.mxu0 %v1774
    %1796 = vmatprep.subr.mxu0 0.0
    %1797 = vmatpush1.msra.mxu0 %v1773
    %1798 = vmatprep.subr.mxu0 0.0
    %1799 = vmatpush1.msra.mxu0 %v1772
    %1800 = vmatprep.subr.mxu0 0.0
    %1801 = vmatpush1.msra.mxu0 %v1771
    %1802 = vmatprep.subr.mxu0 0.0
    %1803 = vmatpush1.msra.mxu0 %v1770
    %1804 = vmatprep.subr.mxu0 0.0
    %1805 = vmatpush1.msra.mxu0 %v1769
    %1806 = vmatprep.subr.mxu0 0.0
    %1807 = vmatpush1.msra.mxu0 %v1768
    %1808 = vmatprep.subr.mxu0 0.0
    %1809 = vmatpush1.msra.mxu0 %v1767
    %1810 = vmatprep.subr.mxu0 0.0
    %1811 = vmatpush1.msra.mxu0 %v1766
    %1812 = vmatprep.subr.mxu0 0.0
    %1813 = vmatpush1.msra.mxu0 %v1765
    %1814 = vmatprep.subr.mxu0 0.0
    %1815 = vmatpush1.msra.mxu0 %v1764
    %1816 = vmatprep.subr.mxu0 0.0
    %1817 = vmatpush1.msra.mxu0 %v1763
    %1818 = vmatprep.subr.mxu0 0.0
    %1819 = vmatpush2.msra.mxu0 0.0
    %1820 = vmatprep.subr.mxu0 0.0
    %1821 = vmatpush2.msra.mxu0 0.0
    %1822 = vmatprep.subr.mxu0 0.0
    %1823 = vmatpush2.msra.mxu0 0.0
    %1824 = vmatprep.subr.mxu0 0.0
    %1825 = vmatpush2.msra.mxu0 0.0
    %1826 = vmatprep.subr.mxu0 0.0
    %1827 = vmatpush2.msra.mxu0 0.0
    %1828 = vmatprep.subr.mxu0 0.0
    %1829 = vmatpush2.msra.mxu0 0.0
    %1830 = vmatprep.subr.mxu0 0.0
    %1831 = vmatpush2.msra.mxu0 0.0
    %1832 = vmatprep.subr.mxu0 0.0
    %1833 = vmatpush2.msra.mxu0 0.0
    %1834 = vmatprep.subr.mxu0 0.0
    %1835 = vmatpush2.msra.mxu0 0.0
    %1836 = vmatprep.subr.mxu0 0.0
    %1837 = vmatpush2.msra.mxu0 0.0
    %1838 = vmatprep.subr.mxu0 0.0
    %1839 = vmatpush2.msra.mxu0 0.0
    %1840 = vmatprep.subr.mxu0 0.0
    %1841 = vmatpush2.msra.mxu0 0.0
    %1842 = vmatprep.subr.mxu0 0.0
    %1843 = vmatpush2.msra.mxu0 0.0
    %1844 = vmatprep.subr.mxu0 0.0
    %1845 = vmatpush2.msra.mxu0 0.0
    %1846 = vmatprep.subr.mxu0 0.0
    %1847 = vmatpush2.msra.mxu0 0.0
    %1848 = vmatprep.subr.mxu0 0.0
    %1849 = vmatpush2.msra.mxu0 0.0
    %1850 = vmatprep.mubr.f32.mxu0 0.0
    %1851 = vmatmul.mubr.f32.gmra.mxu0 %v1136
    %v1852 = vpop.f32.mrf.mxu0
    %v1853 = vadd.f32 %v1784, %v1852
    %v1854 = vpop.f32.mrf.mxu0
    %1855 = vmatprep.mubr.f32.mxu0 0.0
    %1856 = vmatmul.mubr.f32.gmra.mxu0 %v1762
    %v1857 = vpop.f32.mrf.mxu0
    %v1858 = vadd.f32 %v1784, %v1857
    %v1859 = vpop.f32.mrf.mxu0
    %1860 = vdwg.mxu0
    %v1861 = vadd.f32 %v152, %v1853
    %v1862 = vadd.f32 %v153, %v1858
    %v1863 = vld [vmem:[%s11] sm:$0x1]
    %v1864 = vld [vmem:[%s12] sm:$0x1]
    %1865 = vadd.xlane.f32.xlu0 %v1861
    %v1866 = vpop.xlane.xlu0 %1865
    %1867 = vadd.xlane.f32.xlu0 %v1862
    %v1868 = vpop.xlane.xlu0 %1867
    %v1869 = vmul.f32 %v1861, %v1861
    %v1870 = vmul.f32 %v1862, %v1862
    %1871 = vadd.xlane.f32.xlu0 %v1869
    %v1872 = vpop.xlane.xlu0 %1871
    %1873 = vadd.xlane.f32.xlu0 %v1870
    %v1874 = vpop.xlane.xlu0 %1873
    %v1875 = vmul.f32 %v1866, 0.03125
    %v1876 = vmul.f32 %v1868, 0.03125
    %v1877 = vmul.f32 %v1872, 0.03125
    %v1878 = vmul.f32 %v1874, 0.03125
    %v1879 = vmul.f32 %v1875, %v1875
    %v1880 = vmul.f32 %v1876, %v1876
    %v1881 = vsub.f32 %v1877, %v1879
    %v1882 = vsub.f32 %v1878, %v1880
    %v1883 = vsub.f32 %v1861, %v1875
    %v1884 = vsub.f32 %v1862, %v1876
    %v1885 = vadd.f32 %v1881, 1e-05
    %v1886 = vadd.f32 %v1882, 1e-05
    %v1887 = vrsqrt.pop %v1885
    %v1888 = vrsqrt.pop %v1886
    %v1889 = vmul.f32 %v1883, %v1887
    %v1890 = vmul.f32 %v1884, %v1888
    %v1892 = vlaneseq
    %v1893 = vshrl.u32 %v1892, 7
    %v1894 = vsub.s32 0, %v1893
    %v1895 = vrot.slane %v1863, %v1894
    %v1897 = vmul.f32 %v1889, %v1895
    %v1898 = vmul.f32 %v1890, %v1895
    %v1900 = vlaneseq
    %v1901 = vshrl.u32 %v1900, 7
    %v1902 = vsub.s32 0, %v1901
    %v1903 = vrot.slane %v1864, %v1902
    %v1905 = vadd.f32 %v1897, %v1903
    %v1906 = vadd.f32 %v1898, %v1903
    %v1907 = vld [vmem:[#allocation11] sm:$0xff]
    %v1908 = vld [vmem:[#allocation11 + $0x8] sm:$0xff]
    %v1909 = vld [vmem:[#allocation11 + $0x10] sm:$0xff]
    %v1910 = vld [vmem:[#allocation11 + $0x18] sm:$0xff]
    %v1911 = vld [vmem:[#allocation11 + $0x20] sm:$0xff]
    %v1912 = vld [vmem:[#allocation11 + $0x28] sm:$0xff]
    %v1913 = vld [vmem:[#allocation11 + $0x30] sm:$0xff]
    %v1914 = vld [vmem:[#allocation11 + $0x38] sm:$0xff]
    %v1915 = vld [vmem:[#allocation11 + $0x40] sm:$0xff]
    %v1916 = vld [vmem:[#allocation11 + $0x48] sm:$0xff]
    %v1917 = vld [vmem:[#allocation11 + $0x50] sm:$0xff]
    %v1918 = vld [vmem:[#allocation11 + $0x58] sm:$0xff]
    %v1919 = vld [vmem:[#allocation11 + $0x60] sm:$0xff]
    %v1920 = vld [vmem:[#allocation11 + $0x68] sm:$0xff]
    %v1921 = vld [vmem:[#allocation11 + $0x70] sm:$0xff]
    %v1922 = vld [vmem:[#allocation11 + $0x78] sm:$0xff]
    %v1923 = vld [vmem:[%s14] sm:$0x1]
    %v1925 = vlaneseq
    %v1926 = vshrl.u32 %v1925, 7
    %v1927 = vsub.s32 0, %v1926
    %v1928 = vrot.slane %v1923, %v1927
    %1930 = vmatprep.subr.mxu0 0.0
    %1931 = vmatpush1.msra.mxu0 %v1922
    %1932 = vmatprep.subr.mxu0 0.0
    %1933 = vmatpush1.msra.mxu0 %v1921
    %1934 = vmatprep.subr.mxu0 0.0
    %1935 = vmatpush1.msra.mxu0 %v1920
    %1936 = vmatprep.subr.mxu0 0.0
    %1937 = vmatpush1.msra.mxu0 %v1919
    %1938 = vmatprep.subr.mxu0 0.0
    %1939 = vmatpush1.msra.mxu0 %v1918
    %1940 = vmatprep.subr.mxu0 0.0
    %1941 = vmatpush1.msra.mxu0 %v1917
    %1942 = vmatprep.subr.mxu0 0.0
    %1943 = vmatpush1.msra.mxu0 %v1916
    %1944 = vmatprep.subr.mxu0 0.0
    %1945 = vmatpush1.msra.mxu0 %v1915
    %1946 = vmatprep.subr.mxu0 0.0
    %1947 = vmatpush1.msra.mxu0 %v1914
    %1948 = vmatprep.subr.mxu0 0.0
    %1949 = vmatpush1.msra.mxu0 %v1913
    %1950 = vmatprep.subr.mxu0 0.0
    %1951 = vmatpush1.msra.mxu0 %v1912
    %1952 = vmatprep.subr.mxu0 0.0
    %1953 = vmatpush1.msra.mxu0 %v1911
    %1954 = vmatprep.subr.mxu0 0.0
    %1955 = vmatpush1.msra.mxu0 %v1910
    %1956 = vmatprep.subr.mxu0 0.0
    %1957 = vmatpush1.msra.mxu0 %v1909
    %1958 = vmatprep.subr.mxu0 0.0
    %1959 = vmatpush1.msra.mxu0 %v1908
    %1960 = vmatprep.subr.mxu0 0.0
    %1961 = vmatpush1.msra.mxu0 %v1907
    %1962 = vmatprep.subr.mxu0 0.0
    %1963 = vmatpush2.msra.mxu0 0.0
    %1964 = vmatprep.subr.mxu0 0.0
    %1965 = vmatpush2.msra.mxu0 0.0
    %1966 = vmatprep.subr.mxu0 0.0
    %1967 = vmatpush2.msra.mxu0 0.0
    %1968 = vmatprep.subr.mxu0 0.0
    %1969 = vmatpush2.msra.mxu0 0.0
    %1970 = vmatprep.subr.mxu0 0.0
    %1971 = vmatpush2.msra.mxu0 0.0
    %1972 = vmatprep.subr.mxu0 0.0
    %1973 = vmatpush2.msra.mxu0 0.0
    %1974 = vmatprep.subr.mxu0 0.0
    %1975 = vmatpush2.msra.mxu0 0.0
    %1976 = vmatprep.subr.mxu0 0.0
    %1977 = vmatpush2.msra.mxu0 0.0
    %1978 = vmatprep.subr.mxu0 0.0
    %1979 = vmatpush2.msra.mxu0 0.0
    %1980 = vmatprep.subr.mxu0 0.0
    %1981 = vmatpush2.msra.mxu0 0.0
    %1982 = vmatprep.subr.mxu0 0.0
    %1983 = vmatpush2.msra.mxu0 0.0
    %1984 = vmatprep.subr.mxu0 0.0
    %1985 = vmatpush2.msra.mxu0 0.0
    %1986 = vmatprep.subr.mxu0 0.0
    %1987 = vmatpush2.msra.mxu0 0.0
    %1988 = vmatprep.subr.mxu0 0.0
    %1989 = vmatpush2.msra.mxu0 0.0
    %1990 = vmatprep.subr.mxu0 0.0
    %1991 = vmatpush2.msra.mxu0 0.0
    %1992 = vmatprep.subr.mxu0 0.0
    %1993 = vmatpush2.msra.mxu0 0.0
    %1994 = vmatprep.mubr.f32.mxu0 0.0
    %1995 = vmatmul.mubr.f32.gmra.mxu0 %v1905
    %v1996 = vpop.f32.mrf.mxu0
    %v1997 = vadd.f32 %v1928, %v1996
    %v1998 = vpop.f32.mrf.mxu0
    %1999 = vmatprep.mubr.f32.mxu0 0.0
    %2000 = vmatmul.mubr.f32.gmra.mxu0 %v1906
    %v2001 = vpop.f32.mrf.mxu0
    %v2002 = vadd.f32 %v1928, %v2001
    %v2003 = vpop.f32.mrf.mxu0
    %2004 = vdwg.mxu0
    %v2005 = vmul.f32 %v1997, 0.5
    %v2006 = vmul.f32 %v2002, 0.5
    %v2007 = vmul.f32 %v1997, 0.70710677
    %v2008 = vmul.f32 %v2002, 0.70710677
    %v2009 = verf.f32.pop %v2007
    %v2010 = verf.f32.pop %v2008
    %v2011 = vadd.f32 %v2009, 1.0
    %v2012 = vadd.f32 %v2010, 1.0
    %v2013 = vmul.f32 %v2005, %v2011
    %v2014 = vmul.f32 %v2006, %v2012
    %v2015 = vld [vmem:[#allocation13] sm:$0xff]
    %v2016 = vld [vmem:[#allocation13 + $0x8] sm:$0xff]
    %v2017 = vld [vmem:[#allocation13 + $0x10] sm:$0xff]
    %v2018 = vld [vmem:[#allocation13 + $0x18] sm:$0xff]
    %v2019 = vld [vmem:[#allocation13 + $0x20] sm:$0xff]
    %v2020 = vld [vmem:[#allocation13 + $0x28] sm:$0xff]
    %v2021 = vld [vmem:[#allocation13 + $0x30] sm:$0xff]
    %v2022 = vld [vmem:[#allocation13 + $0x38] sm:$0xff]
    %v2023 = vld [vmem:[#allocation13 + $0x40] sm:$0xff]
    %v2024 = vld [vmem:[#allocation13 + $0x48] sm:$0xff]
    %v2025 = vld [vmem:[#allocation13 + $0x50] sm:$0xff]
    %v2026 = vld [vmem:[#allocation13 + $0x58] sm:$0xff]
    %v2027 = vld [vmem:[#allocation13 + $0x60] sm:$0xff]
    %v2028 = vld [vmem:[#allocation13 + $0x68] sm:$0xff]
    %v2029 = vld [vmem:[#allocation13 + $0x70] sm:$0xff]
    %v2030 = vld [vmem:[#allocation13 + $0x78] sm:$0xff]
    %v2031 = vld [vmem:[%s16] sm:$0x1]
    %v2033 = vlaneseq
    %v2034 = vshrl.u32 %v2033, 7
    %v2035 = vsub.s32 0, %v2034
    %v2036 = vrot.slane %v2031, %v2035
    %2038 = vmatprep.subr.mxu0 0.0
    %2039 = vmatpush1.msra.mxu0 %v2030
    %2040 = vmatprep.subr.mxu0 0.0
    %2041 = vmatpush1.msra.mxu0 %v2029
    %2042 = vmatprep.subr.mxu0 0.0
    %2043 = vmatpush1.msra.mxu0 %v2028
    %2044 = vmatprep.subr.mxu0 0.0
    %2045 = vmatpush1.msra.mxu0 %v2027
    %2046 = vmatprep.subr.mxu0 0.0
    %2047 = vmatpush1.msra.mxu0 %v2026
    %2048 = vmatprep.subr.mxu0 0.0
    %2049 = vmatpush1.msra.mxu0 %v2025
    %2050 = vmatprep.subr.mxu0 0.0
    %2051 = vmatpush1.msra.mxu0 %v2024
    %2052 = vmatprep.subr.mxu0 0.0
    %2053 = vmatpush1.msra.mxu0 %v2023
    %2054 = vmatprep.subr.mxu0 0.0
    %2055 = vmatpush1.msra.mxu0 %v2022
    %2056 = vmatprep.subr.mxu0 0.0
    %2057 = vmatpush1.msra.mxu0 %v2021
    %2058 = vmatprep.subr.mxu0 0.0
    %2059 = vmatpush1.msra.mxu0 %v2020
    %2060 = vmatprep.subr.mxu0 0.0
    %2061 = vmatpush1.msra.mxu0 %v2019
    %2062 = vmatprep.subr.mxu0 0.0
    %2063 = vmatpush1.msra.mxu0 %v2018
    %2064 = vmatprep.subr.mxu0 0.0
    %2065 = vmatpush1.msra.mxu0 %v2017
    %2066 = vmatprep.subr.mxu0 0.0
    %2067 = vmatpush1.msra.mxu0 %v2016
    %2068 = vmatprep.subr.mxu0 0.0
    %2069 = vmatpush1.msra.mxu0 %v2015
    %2070 = vmatprep.subr.mxu0 0.0
    %2071 = vmatpush2.msra.mxu0 0.0
    %2072 = vmatprep.subr.mxu0 0.0
    %2073 = vmatpush2.msra.mxu0 0.0
    %2074 = vmatprep.subr.mxu0 0.0
    %2075 = vmatpush2.msra.mxu0 0.0
    %2076 = vmatprep.subr.mxu0 0.0
    %2077 = vmatpush2.msra.mxu0 0.0
    %2078 = vmatprep.subr.mxu0 0.0
    %2079 = vmatpush2.msra.mxu0 0.0
    %2080 = vmatprep.subr.mxu0 0.0
    %2081 = vmatpush2.msra.mxu0 0.0
    %2082 = vmatprep.subr.mxu0 0.0
    %2083 = vmatpush2.msra.mxu0 0.0
    %2084 = vmatprep.subr.mxu0 0.0
    %2085 = vmatpush2.msra.mxu0 0.0
    %2086 = vmatprep.subr.mxu0 0.0
    %2087 = vmatpush2.msra.mxu0 0.0
    %2088 = vmatprep.subr.mxu0 0.0
    %2089 = vmatpush2.msra.mxu0 0.0
    %2090 = vmatprep.subr.mxu0 0.0
    %2091 = vmatpush2.msra.mxu0 0.0
    %2092 = vmatprep.subr.mxu0 0.0
    %2093 = vmatpush2.msra.mxu0 0.0
    %2094 = vmatprep.subr.mxu0 0.0
    %2095 = vmatpush2.msra.mxu0 0.0
    %2096 = vmatprep.subr.mxu0 0.0
    %2097 = vmatpush2.msra.mxu0 0.0
    %2098 = vmatprep.subr.mxu0 0.0
    %2099 = vmatpush2.msra.mxu0 0.0
    %2100 = vmatprep.subr.mxu0 0.0
    %2101 = vmatpush2.msra.mxu0 0.0
    %2102 = vmatprep.mubr.f32.mxu0 0.0
    %2103 = vmatmul.mubr.f32.gmra.mxu0 %v2013
    %v2104 = vpop.f32.mrf.mxu0
    %v2105 = vadd.f32 %v2036, %v2104
    %v2106 = vpop.f32.mrf.mxu0
    %2107 = vmatprep.mubr.f32.mxu0 0.0
    %2108 = vmatmul.mubr.f32.gmra.mxu0 %v2014
    %v2109 = vpop.f32.mrf.mxu0
    %v2110 = vadd.f32 %v2036, %v2109
    %v2111 = vpop.f32.mrf.mxu0
    %2112 = vdwg.mxu0
    %v2113 = vadd.f32 %v1861, %v2105
    %v2114 = vadd.f32 %v1862, %v2110
    %2115 = vst [vmem:[#allocation14] sm:$0xff] %v2113
    %2116 = vst [vmem:[#allocation14 + $0x8] sm:$0xff] %v2114
    // Predicated region
    $region98: #{tpu_custom_call.1} parent=1 // pred_check
      _
    $region99: #{tpu_custom_call.1} parent=1 // pred_check_branch
      %2118 = sbr.rel (0) target = $region101
    $region100: #{tpu_custom_call.1} parent=1 // pred_region
      %s2120 = ssub.s32 256, 256
      %2121 = vsyncadd [#allocation4], %s2120
      %s2122 = sshll.u32 [#allocation14], 4
      %s2123 = int_to_ptr.vmem [resolvable:$true] %s2122
      %2128 = dma.vmem_to_hbm [thread:$0]  %s2123, 256, %s17, [#allocation4], 128, 128, 8
    $region101: #{tpu_custom_call.1} parent=1 // pred_fallthru
      _
    // Predicated region
    $region102: #{tpu_custom_call.1} parent=1 // pred_check
      _
    $region103: #{tpu_custom_call.1} parent=1 // pred_check_branch
      %2130 = sbr.rel (0) target = $region105
    $region104: #{tpu_custom_call.1} parent=1 // pred_region
      %2131 = dma.done [#allocation4], 256
    $region105: #{tpu_custom_call.1} parent=1 // pred_fallthru
      _
    %2132 = vsyncpa [#allocation3], 1
    %2133 = vsyncpa [#allocation6], 1
    %2134 = vsyncpa [#allocation9], 1
    %2135 = vsyncpa [#allocation12], 1
    %2136 = vsyncpa [#allocation4], 1

</llo_original>
